<compile_context>
chip_gen: v6e
topology: v6e:2x2x1
jax: 0.10.0
libtpu: 0.0.40
codegen_flags: <defaults>
</compile_context>

<pallas_src>
import jax
import jax.numpy as jnp
from jax.experimental import pallas as pl
from jax.experimental.pallas import tpu as pltpu

LN_EPS = 1e-5


def distilbert_embed(input_ids, W_E, W_pos, ln_w, ln_b, *, block_seq=None):
    batch, seq = input_ids.shape
    d_vocab, d_model = W_E.shape
    n_ctx = W_pos.shape[0]
    assert seq <= n_ctx, f"seq ({seq}) must be <= n_ctx ({n_ctx})"

    if block_seq is None:
        block_seq = min(seq, 256)
        while seq % block_seq != 0:
            block_seq -= 1
    T = int(block_seq)
    assert seq % T == 0, f"seq ({seq}) must be divisible by block_seq ({T})"
    n_s = seq // T

    ids_flat = input_ids.reshape(-1).astype(jnp.int32)

    def kernel(ids_ref, wpos_ref, gamma_ref, beta_ref, we_hbm, out_ref,
               gbuf, sem):
        b = pl.program_id(0)
        s = pl.program_id(1)
        base = b * seq + s * T          # flat index of first token of this tile
        slot = s % 2

        def row_copy(tile_base, t, slot_):
            # One embedding-table row: W_E[input_ids[...]] -> gather buffer.
            row = ids_ref[tile_base + t]
            return pltpu.make_async_copy(
                we_hbm.at[row], gbuf.at[slot_, t], sem.at[slot_])

        # Prime the pipeline: fetch this batch's first tile.
        @pl.when(s == 0)
        def _():
            for t in range(T):
                row_copy(base, t, slot).start()

        # Prefetch the next tile of the same batch into the other slot so its
        # row DMAs overlap this tile's LayerNorm.
        @pl.when(s + 1 < n_s)
        def _():
            for t in range(T):
                row_copy(base + T, t, 1 - slot).start()

        # Wait for the current tile's T row copies.
        for t in range(T):
            row_copy(base, t, slot).wait()

        # token + positional embedding, LayerNorm — all math in f32.
        x = gbuf[slot].astype(jnp.float32) + wpos_ref[...].astype(jnp.float32)
        mean = jnp.mean(x, axis=-1, keepdims=True)
        xc = x - mean
        var = jnp.mean(xc * xc, axis=-1, keepdims=True)
        inv = jax.lax.rsqrt(var + LN_EPS)
        y = (xc * inv * gamma_ref[...].astype(jnp.float32)
             + beta_ref[...].astype(jnp.float32))
        out_ref[...] = y.reshape(out_ref.shape).astype(out_ref.dtype)

    grid_spec = pltpu.PrefetchScalarGridSpec(
        num_scalar_prefetch=1,                 # flattened input_ids -> SMEM
        grid=(batch, n_s),
        in_specs=[
            # positional embedding tile W_pos[s*T : (s+1)*T, :]
            pl.BlockSpec((T, d_model), lambda b, s, ids: (s, 0)),
            # LayerNorm scale / bias (same tiny block every step)
            pl.BlockSpec((1, d_model), lambda b, s, ids: (0, 0)),
            pl.BlockSpec((1, d_model), lambda b, s, ids: (0, 0)),
            # embedding table stays in HBM; gathered by manual DMA
            pl.BlockSpec(memory_space=pl.ANY),
        ],
        out_specs=pl.BlockSpec((1, T, d_model), lambda b, s, ids: (b, s, 0)),
        scratch_shapes=[
            pltpu.VMEM((2, T, d_model), W_E.dtype),   # double-buffered gather
            pltpu.SemaphoreType.DMA((2,)),            # one DMA sem per slot
        ],
    )

    out = pl.pallas_call(
        kernel,
        grid_spec=grid_spec,
        out_shape=jax.ShapeDtypeStruct((batch, seq, d_model), W_E.dtype),
        compiler_params=pltpu.CompilerParams(
            dimension_semantics=("parallel", "arbitrary")),
    )(ids_flat, W_pos, ln_w.reshape(1, d_model), ln_b.reshape(1, d_model), W_E)
    return out


def distilbert_embed_reference(input_ids, W_E, W_pos, ln_w, ln_b):
    """Pure-JAX reference matching the PyTorch forward."""
    batch, seq = input_ids.shape
    word = W_E[input_ids]                                  # (batch, seq, d_model)
    pos = W_pos[jnp.arange(seq)][None, :, :]               # broadcast over batch
    x = (word + pos).astype(jnp.float32)
    xc = x - x.mean(-1, keepdims=True)
    scale = jnp.sqrt((xc * xc).mean(-1, keepdims=True) + LN_EPS)
    return (xc / scale * ln_w + ln_b).astype(W_E.dtype)


if __name__ == "__main__":
    # Small, deterministic synthetic config (no checkpoint load).
    d_vocab, n_ctx, d_model = 64, 32, 128
    batch, seq = 2, 16

    key = jax.random.PRNGKey(0)
    k_ids, k_we, k_wp, k_lw, k_lb = jax.random.split(key, 5)

    input_ids = jax.random.randint(k_ids, (batch, seq), 0, d_vocab, dtype=jnp.int32)
    W_E = jax.random.normal(k_we, (d_vocab, d_model), jnp.float32) * 0.02
    W_pos = jax.random.normal(k_wp, (n_ctx, d_model), jnp.float32) * 0.02
    ln_w = 1.0 + 0.1 * jax.random.normal(k_lw, (d_model,), jnp.float32)
    ln_b = 0.1 * jax.random.normal(k_lb, (d_model,), jnp.float32)

    ref = distilbert_embed_reference(input_ids, W_E, W_pos, ln_w, ln_b)

    # Multi-tile path (exercises priming + cross-step double-buffered prefetch).
    out = distilbert_embed(input_ids, W_E, W_pos, ln_w, ln_b, block_seq=8)
    out = jax.block_until_ready(out)
    assert out.shape == (batch, seq, d_model)
    assert jnp.allclose(out, ref, atol=1e-5, rtol=1e-5), "mismatch (multi-tile)"

    # Single-tile path (seq == block_seq).
    out1 = distilbert_embed(input_ids, W_E, W_pos, ln_w, ln_b, block_seq=seq)
    out1 = jax.block_until_ready(out1)
    assert jnp.allclose(out1, ref, atol=1e-5, rtol=1e-5), "mismatch (single-tile)"

    print("KERNEL_OK")
</pallas_src>

<mosaic_0001>
module attributes {stable_mosaic.version = 11 : i64} {
  func.func @kernel(%arg0: i32, %arg1: i32, %arg2: memref<32xi32, #tpu.memory_space<smem>>, %arg3: memref<8x128xf32, #tpu.memory_space<vmem>>, %arg4: memref<1x128xf32, #tpu.memory_space<vmem>>, %arg5: memref<1x128xf32, #tpu.memory_space<vmem>>, %arg6: memref<64x128xf32, #tpu.memory_space<any>>, %arg7: memref<1x8x128xf32, #tpu.memory_space<vmem>>, %arg8: memref<2x8x128xf32, #tpu.memory_space<vmem>>, %arg9: memref<2x!tpu.dma_semaphore, #tpu.memory_space<semaphore_mem>>) attributes {dimension_semantics = [#tpu.dimension_semantics<parallel>, #tpu.dimension_semantics<arbitrary>], iteration_bounds = array<i64: 2, 2>, scalar_prefetch = 1 : i64, scratch_operands = 2 : i64, tpu.core_type = #tpu.core_type<tc>, window_params = [{transform_indices = @transform_0, window_bounds = array<i64: 8, 128>}, {pipeline_mode = #tpu.pipeline_mode<synchronous>, transform_indices = @transform_1, window_bounds = array<i64: 1, 128>}, {pipeline_mode = #tpu.pipeline_mode<synchronous>, transform_indices = @transform_2, window_bounds = array<i64: 1, 128>}, {}, {transform_indices = @transform_4, window_bounds = array<i64: 1, 8, 128>}]} {
    %c16_i32 = arith.constant 16 : i32
    %0 = arith.muli %arg0, %c16_i32 : i32
    %c8_i32 = arith.constant 8 : i32
    %1 = arith.muli %arg1, %c8_i32 : i32
    %2 = arith.addi %0, %1 : i32
    %c2_i32 = arith.constant 2 : i32
    %c0_i32 = arith.constant 0 : i32
    %3 = arith.cmpi eq, %c2_i32, %c0_i32 : i32
    %c1_i32 = arith.constant 1 : i32
    %4 = arith.select %3, %c1_i32, %c2_i32 : i32
    %5 = arith.remsi %arg1, %4 : i32
    %c0_i32_0 = arith.constant 0 : i32
    %6 = arith.cmpi ne, %5, %c0_i32_0 : i32
    %c0_i32_1 = arith.constant 0 : i32
    %7 = arith.cmpi slt, %5, %c0_i32_1 : i32
    %c0_i32_2 = arith.constant 0 : i32
    %8 = arith.cmpi slt, %4, %c0_i32_2 : i32
    %9 = arith.xori %7, %8 : i1
    %10 = arith.andi %9, %6 : i1
    %11 = arith.addi %5, %4 : i32
    %12 = arith.select %10, %11, %5 : i32
    %c0_i32_3 = arith.constant 0 : i32
    %13 = arith.cmpi eq, %arg1, %c0_i32_3 : i32
    %14 = arith.extui %13 : i1 to i32
    %c0_i32_4 = arith.constant 0 : i32
    %15 = arith.cmpi ne, %14, %c0_i32_4 : i32
    scf.if %15 {
      %c0_i32_49 = arith.constant 0 : i32
      %121 = arith.addi %2, %c0_i32_49 : i32
      %122 = arith.index_cast %121 : i32 to index
      %123 = memref.load %arg2[%122] : memref<32xi32, #tpu.memory_space<smem>>
      %c0_i32_50 = arith.constant 0 : i32
      %c0_i32_51 = arith.constant 0 : i32
      %124 = tpu.memref_slice %arg6[%123, %c0_i32_51] : memref<64x128xf32, #tpu.memory_space<any>> -> memref<1x128xf32, #tpu.memory_space<any>>
      %125 = tpu.memref_squeeze %124 : memref<1x128xf32, #tpu.memory_space<any>> -> memref<128xf32, #tpu.memory_space<any>>
      %c0_i32_52 = arith.constant 0 : i32
      %126 = tpu.memref_slice %arg8[%12, %c0_i32_50, %c0_i32_52] : memref<2x8x128xf32, #tpu.memory_space<vmem>> -> memref<1x1x128xf32, #tpu.memory_space<vmem>>
      %127 = tpu.memref_squeeze %126 : memref<1x1x128xf32, #tpu.memory_space<vmem>> -> memref<128xf32, #tpu.memory_space<vmem>>
      %128 = tpu.memref_slice %arg9[%12] : memref<2x!tpu.dma_semaphore, #tpu.memory_space<semaphore_mem>> -> memref<1x!tpu.dma_semaphore, #tpu.memory_space<semaphore_mem>>
      %129 = tpu.memref_squeeze %128 : memref<1x!tpu.dma_semaphore, #tpu.memory_space<semaphore_mem>> -> memref<!tpu.dma_semaphore, #tpu.memory_space<semaphore_mem>>
      tpu.enqueue_dma source(%125 : memref<128xf32, #tpu.memory_space<any>>) target(%127 : memref<128xf32, #tpu.memory_space<vmem>>) target_semaphore(%129 : memref<!tpu.dma_semaphore, #tpu.memory_space<semaphore_mem>>)
      %c1_i32_53 = arith.constant 1 : i32
      %130 = arith.addi %2, %c1_i32_53 : i32
      %131 = arith.index_cast %130 : i32 to index
      %132 = memref.load %arg2[%131] : memref<32xi32, #tpu.memory_space<smem>>
      %c1_i32_54 = arith.constant 1 : i32
      %c0_i32_55 = arith.constant 0 : i32
      %133 = tpu.memref_slice %arg6[%132, %c0_i32_55] : memref<64x128xf32, #tpu.memory_space<any>> -> memref<1x128xf32, #tpu.memory_space<any>>
      %134 = tpu.memref_squeeze %133 : memref<1x128xf32, #tpu.memory_space<any>> -> memref<128xf32, #tpu.memory_space<any>>
      %c0_i32_56 = arith.constant 0 : i32
      %135 = tpu.memref_slice %arg8[%12, %c1_i32_54, %c0_i32_56] : memref<2x8x128xf32, #tpu.memory_space<vmem>> -> memref<1x1x128xf32, #tpu.memory_space<vmem>>
      %136 = tpu.memref_squeeze %135 : memref<1x1x128xf32, #tpu.memory_space<vmem>> -> memref<128xf32, #tpu.memory_space<vmem>>
      %137 = tpu.memref_slice %arg9[%12] : memref<2x!tpu.dma_semaphore, #tpu.memory_space<semaphore_mem>> -> memref<1x!tpu.dma_semaphore, #tpu.memory_space<semaphore_mem>>
      %138 = tpu.memref_squeeze %137 : memref<1x!tpu.dma_semaphore, #tpu.memory_space<semaphore_mem>> -> memref<!tpu.dma_semaphore, #tpu.memory_space<semaphore_mem>>
      tpu.enqueue_dma source(%134 : memref<128xf32, #tpu.memory_space<any>>) target(%136 : memref<128xf32, #tpu.memory_space<vmem>>) target_semaphore(%138 : memref<!tpu.dma_semaphore, #tpu.memory_space<semaphore_mem>>)
      %c2_i32_57 = arith.constant 2 : i32
      %139 = arith.addi %2, %c2_i32_57 : i32
      %140 = arith.index_cast %139 : i32 to index
      %141 = memref.load %arg2[%140] : memref<32xi32, #tpu.memory_space<smem>>
      %c2_i32_58 = arith.constant 2 : i32
      %c0_i32_59 = arith.constant 0 : i32
      %142 = tpu.memref_slice %arg6[%141, %c0_i32_59] : memref<64x128xf32, #tpu.memory_space<any>> -> memref<1x128xf32, #tpu.memory_space<any>>
      %143 = tpu.memref_squeeze %142 : memref<1x128xf32, #tpu.memory_space<any>> -> memref<128xf32, #tpu.memory_space<any>>
      %c0_i32_60 = arith.constant 0 : i32
      %144 = tpu.memref_slice %arg8[%12, %c2_i32_58, %c0_i32_60] : memref<2x8x128xf32, #tpu.memory_space<vmem>> -> memref<1x1x128xf32, #tpu.memory_space<vmem>>
      %145 = tpu.memref_squeeze %144 : memref<1x1x128xf32, #tpu.memory_space<vmem>> -> memref<128xf32, #tpu.memory_space<vmem>>
      %146 = tpu.memref_slice %arg9[%12] : memref<2x!tpu.dma_semaphore, #tpu.memory_space<semaphore_mem>> -> memref<1x!tpu.dma_semaphore, #tpu.memory_space<semaphore_mem>>
      %147 = tpu.memref_squeeze %146 : memref<1x!tpu.dma_semaphore, #tpu.memory_space<semaphore_mem>> -> memref<!tpu.dma_semaphore, #tpu.memory_space<semaphore_mem>>
      tpu.enqueue_dma source(%143 : memref<128xf32, #tpu.memory_space<any>>) target(%145 : memref<128xf32, #tpu.memory_space<vmem>>) target_semaphore(%147 : memref<!tpu.dma_semaphore, #tpu.memory_space<semaphore_mem>>)
      %c3_i32_61 = arith.constant 3 : i32
      %148 = arith.addi %2, %c3_i32_61 : i32
      %149 = arith.index_cast %148 : i32 to index
      %150 = memref.load %arg2[%149] : memref<32xi32, #tpu.memory_space<smem>>
      %c3_i32_62 = arith.constant 3 : i32
      %c0_i32_63 = arith.constant 0 : i32
      %151 = tpu.memref_slice %arg6[%150, %c0_i32_63] : memref<64x128xf32, #tpu.memory_space<any>> -> memref<1x128xf32, #tpu.memory_space<any>>
      %152 = tpu.memref_squeeze %151 : memref<1x128xf32, #tpu.memory_space<any>> -> memref<128xf32, #tpu.memory_space<any>>
      %c0_i32_64 = arith.constant 0 : i32
      %153 = tpu.memref_slice %arg8[%12, %c3_i32_62, %c0_i32_64] : memref<2x8x128xf32, #tpu.memory_space<vmem>> -> memref<1x1x128xf32, #tpu.memory_space<vmem>>
      %154 = tpu.memref_squeeze %153 : memref<1x1x128xf32, #tpu.memory_space<vmem>> -> memref<128xf32, #tpu.memory_space<vmem>>
      %155 = tpu.memref_slice %arg9[%12] : memref<2x!tpu.dma_semaphore, #tpu.memory_space<semaphore_mem>> -> memref<1x!tpu.dma_semaphore, #tpu.memory_space<semaphore_mem>>
      %156 = tpu.memref_squeeze %155 : memref<1x!tpu.dma_semaphore, #tpu.memory_space<semaphore_mem>> -> memref<!tpu.dma_semaphore, #tpu.memory_space<semaphore_mem>>
      tpu.enqueue_dma source(%152 : memref<128xf32, #tpu.memory_space<any>>) target(%154 : memref<128xf32, #tpu.memory_space<vmem>>) target_semaphore(%156 : memref<!tpu.dma_semaphore, #tpu.memory_space<semaphore_mem>>)
      %c4_i32_65 = arith.constant 4 : i32
      %157 = arith.addi %2, %c4_i32_65 : i32
      %158 = arith.index_cast %157 : i32 to index
      %159 = memref.load %arg2[%158] : memref<32xi32, #tpu.memory_space<smem>>
      %c4_i32_66 = arith.constant 4 : i32
      %c0_i32_67 = arith.constant 0 : i32
      %160 = tpu.memref_slice %arg6[%159, %c0_i32_67] : memref<64x128xf32, #tpu.memory_space<any>> -> memref<1x128xf32, #tpu.memory_space<any>>
      %161 = tpu.memref_squeeze %160 : memref<1x128xf32, #tpu.memory_space<any>> -> memref<128xf32, #tpu.memory_space<any>>
      %c0_i32_68 = arith.constant 0 : i32
      %162 = tpu.memref_slice %arg8[%12, %c4_i32_66, %c0_i32_68] : memref<2x8x128xf32, #tpu.memory_space<vmem>> -> memref<1x1x128xf32, #tpu.memory_space<vmem>>
      %163 = tpu.memref_squeeze %162 : memref<1x1x128xf32, #tpu.memory_space<vmem>> -> memref<128xf32, #tpu.memory_space<vmem>>
      %164 = tpu.memref_slice %arg9[%12] : memref<2x!tpu.dma_semaphore, #tpu.memory_space<semaphore_mem>> -> memref<1x!tpu.dma_semaphore, #tpu.memory_space<semaphore_mem>>
      %165 = tpu.memref_squeeze %164 : memref<1x!tpu.dma_semaphore, #tpu.memory_space<semaphore_mem>> -> memref<!tpu.dma_semaphore, #tpu.memory_space<semaphore_mem>>
      tpu.enqueue_dma source(%161 : memref<128xf32, #tpu.memory_space<any>>) target(%163 : memref<128xf32, #tpu.memory_space<vmem>>) target_semaphore(%165 : memref<!tpu.dma_semaphore, #tpu.memory_space<semaphore_mem>>)
      %c5_i32_69 = arith.constant 5 : i32
      %166 = arith.addi %2, %c5_i32_69 : i32
      %167 = arith.index_cast %166 : i32 to index
      %168 = memref.load %arg2[%167] : memref<32xi32, #tpu.memory_space<smem>>
      %c5_i32_70 = arith.constant 5 : i32
      %c0_i32_71 = arith.constant 0 : i32
      %169 = tpu.memref_slice %arg6[%168, %c0_i32_71] : memref<64x128xf32, #tpu.memory_space<any>> -> memref<1x128xf32, #tpu.memory_space<any>>
      %170 = tpu.memref_squeeze %169 : memref<1x128xf32, #tpu.memory_space<any>> -> memref<128xf32, #tpu.memory_space<any>>
      %c0_i32_72 = arith.constant 0 : i32
      %171 = tpu.memref_slice %arg8[%12, %c5_i32_70, %c0_i32_72] : memref<2x8x128xf32, #tpu.memory_space<vmem>> -> memref<1x1x128xf32, #tpu.memory_space<vmem>>
      %172 = tpu.memref_squeeze %171 : memref<1x1x128xf32, #tpu.memory_space<vmem>> -> memref<128xf32, #tpu.memory_space<vmem>>
      %173 = tpu.memref_slice %arg9[%12] : memref<2x!tpu.dma_semaphore, #tpu.memory_space<semaphore_mem>> -> memref<1x!tpu.dma_semaphore, #tpu.memory_space<semaphore_mem>>
      %174 = tpu.memref_squeeze %173 : memref<1x!tpu.dma_semaphore, #tpu.memory_space<semaphore_mem>> -> memref<!tpu.dma_semaphore, #tpu.memory_space<semaphore_mem>>
      tpu.enqueue_dma source(%170 : memref<128xf32, #tpu.memory_space<any>>) target(%172 : memref<128xf32, #tpu.memory_space<vmem>>) target_semaphore(%174 : memref<!tpu.dma_semaphore, #tpu.memory_space<semaphore_mem>>)
      %c6_i32_73 = arith.constant 6 : i32
      %175 = arith.addi %2, %c6_i32_73 : i32
      %176 = arith.index_cast %175 : i32 to index
      %177 = memref.load %arg2[%176] : memref<32xi32, #tpu.memory_space<smem>>
      %c6_i32_74 = arith.constant 6 : i32
      %c0_i32_75 = arith.constant 0 : i32
      %178 = tpu.memref_slice %arg6[%177, %c0_i32_75] : memref<64x128xf32, #tpu.memory_space<any>> -> memref<1x128xf32, #tpu.memory_space<any>>
      %179 = tpu.memref_squeeze %178 : memref<1x128xf32, #tpu.memory_space<any>> -> memref<128xf32, #tpu.memory_space<any>>
      %c0_i32_76 = arith.constant 0 : i32
      %180 = tpu.memref_slice %arg8[%12, %c6_i32_74, %c0_i32_76] : memref<2x8x128xf32, #tpu.memory_space<vmem>> -> memref<1x1x128xf32, #tpu.memory_space<vmem>>
      %181 = tpu.memref_squeeze %180 : memref<1x1x128xf32, #tpu.memory_space<vmem>> -> memref<128xf32, #tpu.memory_space<vmem>>
      %182 = tpu.memref_slice %arg9[%12] : memref<2x!tpu.dma_semaphore, #tpu.memory_space<semaphore_mem>> -> memref<1x!tpu.dma_semaphore, #tpu.memory_space<semaphore_mem>>
      %183 = tpu.memref_squeeze %182 : memref<1x!tpu.dma_semaphore, #tpu.memory_space<semaphore_mem>> -> memref<!tpu.dma_semaphore, #tpu.memory_space<semaphore_mem>>
      tpu.enqueue_dma source(%179 : memref<128xf32, #tpu.memory_space<any>>) target(%181 : memref<128xf32, #tpu.memory_space<vmem>>) target_semaphore(%183 : memref<!tpu.dma_semaphore, #tpu.memory_space<semaphore_mem>>)
      %c7_i32_77 = arith.constant 7 : i32
      %184 = arith.addi %2, %c7_i32_77 : i32
      %185 = arith.index_cast %184 : i32 to index
      %186 = memref.load %arg2[%185] : memref<32xi32, #tpu.memory_space<smem>>
      %c7_i32_78 = arith.constant 7 : i32
      %c0_i32_79 = arith.constant 0 : i32
      %187 = tpu.memref_slice %arg6[%186, %c0_i32_79] : memref<64x128xf32, #tpu.memory_space<any>> -> memref<1x128xf32, #tpu.memory_space<any>>
      %188 = tpu.memref_squeeze %187 : memref<1x128xf32, #tpu.memory_space<any>> -> memref<128xf32, #tpu.memory_space<any>>
      %c0_i32_80 = arith.constant 0 : i32
      %189 = tpu.memref_slice %arg8[%12, %c7_i32_78, %c0_i32_80] : memref<2x8x128xf32, #tpu.memory_space<vmem>> -> memref<1x1x128xf32, #tpu.memory_space<vmem>>
      %190 = tpu.memref_squeeze %189 : memref<1x1x128xf32, #tpu.memory_space<vmem>> -> memref<128xf32, #tpu.memory_space<vmem>>
      %191 = tpu.memref_slice %arg9[%12] : memref<2x!tpu.dma_semaphore, #tpu.memory_space<semaphore_mem>> -> memref<1x!tpu.dma_semaphore, #tpu.memory_space<semaphore_mem>>
      %192 = tpu.memref_squeeze %191 : memref<1x!tpu.dma_semaphore, #tpu.memory_space<semaphore_mem>> -> memref<!tpu.dma_semaphore, #tpu.memory_space<semaphore_mem>>
      tpu.enqueue_dma source(%188 : memref<128xf32, #tpu.memory_space<any>>) target(%190 : memref<128xf32, #tpu.memory_space<vmem>>) target_semaphore(%192 : memref<!tpu.dma_semaphore, #tpu.memory_space<semaphore_mem>>)
    } else {
    }
    %c1_i32_5 = arith.constant 1 : i32
    %16 = arith.addi %arg1, %c1_i32_5 : i32
    %c2_i32_6 = arith.constant 2 : i32
    %17 = arith.cmpi slt, %16, %c2_i32_6 : i32
    %18 = arith.extui %17 : i1 to i32
    %c0_i32_7 = arith.constant 0 : i32
    %19 = arith.cmpi ne, %18, %c0_i32_7 : i32
    scf.if %19 {
      %c8_i32_49 = arith.constant 8 : i32
      %121 = arith.addi %2, %c8_i32_49 : i32
      %c1_i32_50 = arith.constant 1 : i32
      %122 = arith.subi %c1_i32_50, %12 : i32
      %c0_i32_51 = arith.constant 0 : i32
      %123 = arith.addi %121, %c0_i32_51 : i32
      %124 = arith.index_cast %123 : i32 to index
      %125 = memref.load %arg2[%124] : memref<32xi32, #tpu.memory_space<smem>>
      %c0_i32_52 = arith.constant 0 : i32
      %c0_i32_53 = arith.constant 0 : i32
      %126 = tpu.memref_slice %arg6[%125, %c0_i32_53] : memref<64x128xf32, #tpu.memory_space<any>> -> memref<1x128xf32, #tpu.memory_space<any>>
      %127 = tpu.memref_squeeze %126 : memref<1x128xf32, #tpu.memory_space<any>> -> memref<128xf32, #tpu.memory_space<any>>
      %c0_i32_54 = arith.constant 0 : i32
      %128 = tpu.memref_slice %arg8[%122, %c0_i32_52, %c0_i32_54] : memref<2x8x128xf32, #tpu.memory_space<vmem>> -> memref<1x1x128xf32, #tpu.memory_space<vmem>>
      %129 = tpu.memref_squeeze %128 : memref<1x1x128xf32, #tpu.memory_space<vmem>> -> memref<128xf32, #tpu.memory_space<vmem>>
      %130 = tpu.memref_slice %arg9[%122] : memref<2x!tpu.dma_semaphore, #tpu.memory_space<semaphore_mem>> -> memref<1x!tpu.dma_semaphore, #tpu.memory_space<semaphore_mem>>
      %131 = tpu.memref_squeeze %130 : memref<1x!tpu.dma_semaphore, #tpu.memory_space<semaphore_mem>> -> memref<!tpu.dma_semaphore, #tpu.memory_space<semaphore_mem>>
      tpu.enqueue_dma source(%127 : memref<128xf32, #tpu.memory_space<any>>) target(%129 : memref<128xf32, #tpu.memory_space<vmem>>) target_semaphore(%131 : memref<!tpu.dma_semaphore, #tpu.memory_space<semaphore_mem>>)
      %c8_i32_55 = arith.constant 8 : i32
      %132 = arith.addi %2, %c8_i32_55 : i32
      %c1_i32_56 = arith.constant 1 : i32
      %133 = arith.subi %c1_i32_56, %12 : i32
      %c1_i32_57 = arith.constant 1 : i32
      %134 = arith.addi %132, %c1_i32_57 : i32
      %135 = arith.index_cast %134 : i32 to index
      %136 = memref.load %arg2[%135] : memref<32xi32, #tpu.memory_space<smem>>
      %c1_i32_58 = arith.constant 1 : i32
      %c0_i32_59 = arith.constant 0 : i32
      %137 = tpu.memref_slice %arg6[%136, %c0_i32_59] : memref<64x128xf32, #tpu.memory_space<any>> -> memref<1x128xf32, #tpu.memory_space<any>>
      %138 = tpu.memref_squeeze %137 : memref<1x128xf32, #tpu.memory_space<any>> -> memref<128xf32, #tpu.memory_space<any>>
      %c0_i32_60 = arith.constant 0 : i32
      %139 = tpu.memref_slice %arg8[%133, %c1_i32_58, %c0_i32_60] : memref<2x8x128xf32, #tpu.memory_space<vmem>> -> memref<1x1x128xf32, #tpu.memory_space<vmem>>
      %140 = tpu.memref_squeeze %139 : memref<1x1x128xf32, #tpu.memory_space<vmem>> -> memref<128xf32, #tpu.memory_space<vmem>>
      %141 = tpu.memref_slice %arg9[%133] : memref<2x!tpu.dma_semaphore, #tpu.memory_space<semaphore_mem>> -> memref<1x!tpu.dma_semaphore, #tpu.memory_space<semaphore_mem>>
      %142 = tpu.memref_squeeze %141 : memref<1x!tpu.dma_semaphore, #tpu.memory_space<semaphore_mem>> -> memref<!tpu.dma_semaphore, #tpu.memory_space<semaphore_mem>>
      tpu.enqueue_dma source(%138 : memref<128xf32, #tpu.memory_space<any>>) target(%140 : memref<128xf32, #tpu.memory_space<vmem>>) target_semaphore(%142 : memref<!tpu.dma_semaphore, #tpu.memory_space<semaphore_mem>>)
      %c8_i32_61 = arith.constant 8 : i32
      %143 = arith.addi %2, %c8_i32_61 : i32
      %c1_i32_62 = arith.constant 1 : i32
      %144 = arith.subi %c1_i32_62, %12 : i32
      %c2_i32_63 = arith.constant 2 : i32
      %145 = arith.addi %143, %c2_i32_63 : i32
      %146 = arith.index_cast %145 : i32 to index
      %147 = memref.load %arg2[%146] : memref<32xi32, #tpu.memory_space<smem>>
      %c2_i32_64 = arith.constant 2 : i32
      %c0_i32_65 = arith.constant 0 : i32
      %148 = tpu.memref_slice %arg6[%147, %c0_i32_65] : memref<64x128xf32, #tpu.memory_space<any>> -> memref<1x128xf32, #tpu.memory_space<any>>
      %149 = tpu.memref_squeeze %148 : memref<1x128xf32, #tpu.memory_space<any>> -> memref<128xf32, #tpu.memory_space<any>>
      %c0_i32_66 = arith.constant 0 : i32
      %150 = tpu.memref_slice %arg8[%144, %c2_i32_64, %c0_i32_66] : memref<2x8x128xf32, #tpu.memory_space<vmem>> -> memref<1x1x128xf32, #tpu.memory_space<vmem>>
      %151 = tpu.memref_squeeze %150 : memref<1x1x128xf32, #tpu.memory_space<vmem>> -> memref<128xf32, #tpu.memory_space<vmem>>
      %152 = tpu.memref_slice %arg9[%144] : memref<2x!tpu.dma_semaphore, #tpu.memory_space<semaphore_mem>> -> memref<1x!tpu.dma_semaphore, #tpu.memory_space<semaphore_mem>>
      %153 = tpu.memref_squeeze %152 : memref<1x!tpu.dma_semaphore, #tpu.memory_space<semaphore_mem>> -> memref<!tpu.dma_semaphore, #tpu.memory_space<semaphore_mem>>
      tpu.enqueue_dma source(%149 : memref<128xf32, #tpu.memory_space<any>>) target(%151 : memref<128xf32, #tpu.memory_space<vmem>>) target_semaphore(%153 : memref<!tpu.dma_semaphore, #tpu.memory_space<semaphore_mem>>)
      %c8_i32_67 = arith.constant 8 : i32
      %154 = arith.addi %2, %c8_i32_67 : i32
      %c1_i32_68 = arith.constant 1 : i32
      %155 = arith.subi %c1_i32_68, %12 : i32
      %c3_i32_69 = arith.constant 3 : i32
      %156 = arith.addi %154, %c3_i32_69 : i32
      %157 = arith.index_cast %156 : i32 to index
      %158 = memref.load %arg2[%157] : memref<32xi32, #tpu.memory_space<smem>>
      %c3_i32_70 = arith.constant 3 : i32
      %c0_i32_71 = arith.constant 0 : i32
      %159 = tpu.memref_slice %arg6[%158, %c0_i32_71] : memref<64x128xf32, #tpu.memory_space<any>> -> memref<1x128xf32, #tpu.memory_space<any>>
      %160 = tpu.memref_squeeze %159 : memref<1x128xf32, #tpu.memory_space<any>> -> memref<128xf32, #tpu.memory_space<any>>
      %c0_i32_72 = arith.constant 0 : i32
      %161 = tpu.memref_slice %arg8[%155, %c3_i32_70, %c0_i32_72] : memref<2x8x128xf32, #tpu.memory_space<vmem>> -> memref<1x1x128xf32, #tpu.memory_space<vmem>>
      %162 = tpu.memref_squeeze %161 : memref<1x1x128xf32, #tpu.memory_space<vmem>> -> memref<128xf32, #tpu.memory_space<vmem>>
      %163 = tpu.memref_slice %arg9[%155] : memref<2x!tpu.dma_semaphore, #tpu.memory_space<semaphore_mem>> -> memref<1x!tpu.dma_semaphore, #tpu.memory_space<semaphore_mem>>
      %164 = tpu.memref_squeeze %163 : memref<1x!tpu.dma_semaphore, #tpu.memory_space<semaphore_mem>> -> memref<!tpu.dma_semaphore, #tpu.memory_space<semaphore_mem>>
      tpu.enqueue_dma source(%160 : memref<128xf32, #tpu.memory_space<any>>) target(%162 : memref<128xf32, #tpu.memory_space<vmem>>) target_semaphore(%164 : memref<!tpu.dma_semaphore, #tpu.memory_space<semaphore_mem>>)
      %c8_i32_73 = arith.constant 8 : i32
      %165 = arith.addi %2, %c8_i32_73 : i32
      %c1_i32_74 = arith.constant 1 : i32
      %166 = arith.subi %c1_i32_74, %12 : i32
      %c4_i32_75 = arith.constant 4 : i32
      %167 = arith.addi %165, %c4_i32_75 : i32
      %168 = arith.index_cast %167 : i32 to index
      %169 = memref.load %arg2[%168] : memref<32xi32, #tpu.memory_space<smem>>
      %c4_i32_76 = arith.constant 4 : i32
      %c0_i32_77 = arith.constant 0 : i32
      %170 = tpu.memref_slice %arg6[%169, %c0_i32_77] : memref<64x128xf32, #tpu.memory_space<any>> -> memref<1x128xf32, #tpu.memory_space<any>>
      %171 = tpu.memref_squeeze %170 : memref<1x128xf32, #tpu.memory_space<any>> -> memref<128xf32, #tpu.memory_space<any>>
      %c0_i32_78 = arith.constant 0 : i32
      %172 = tpu.memref_slice %arg8[%166, %c4_i32_76, %c0_i32_78] : memref<2x8x128xf32, #tpu.memory_space<vmem>> -> memref<1x1x128xf32, #tpu.memory_space<vmem>>
      %173 = tpu.memref_squeeze %172 : memref<1x1x128xf32, #tpu.memory_space<vmem>> -> memref<128xf32, #tpu.memory_space<vmem>>
      %174 = tpu.memref_slice %arg9[%166] : memref<2x!tpu.dma_semaphore, #tpu.memory_space<semaphore_mem>> -> memref<1x!tpu.dma_semaphore, #tpu.memory_space<semaphore_mem>>
      %175 = tpu.memref_squeeze %174 : memref<1x!tpu.dma_semaphore, #tpu.memory_space<semaphore_mem>> -> memref<!tpu.dma_semaphore, #tpu.memory_space<semaphore_mem>>
      tpu.enqueue_dma source(%171 : memref<128xf32, #tpu.memory_space<any>>) target(%173 : memref<128xf32, #tpu.memory_space<vmem>>) target_semaphore(%175 : memref<!tpu.dma_semaphore, #tpu.memory_space<semaphore_mem>>)
      %c8_i32_79 = arith.constant 8 : i32
      %176 = arith.addi %2, %c8_i32_79 : i32
      %c1_i32_80 = arith.constant 1 : i32
      %177 = arith.subi %c1_i32_80, %12 : i32
      %c5_i32_81 = arith.constant 5 : i32
      %178 = arith.addi %176, %c5_i32_81 : i32
      %179 = arith.index_cast %178 : i32 to index
      %180 = memref.load %arg2[%179] : memref<32xi32, #tpu.memory_space<smem>>
      %c5_i32_82 = arith.constant 5 : i32
      %c0_i32_83 = arith.constant 0 : i32
      %181 = tpu.memref_slice %arg6[%180, %c0_i32_83] : memref<64x128xf32, #tpu.memory_space<any>> -> memref<1x128xf32, #tpu.memory_space<any>>
      %182 = tpu.memref_squeeze %181 : memref<1x128xf32, #tpu.memory_space<any>> -> memref<128xf32, #tpu.memory_space<any>>
      %c0_i32_84 = arith.constant 0 : i32
      %183 = tpu.memref_slice %arg8[%177, %c5_i32_82, %c0_i32_84] : memref<2x8x128xf32, #tpu.memory_space<vmem>> -> memref<1x1x128xf32, #tpu.memory_space<vmem>>
      %184 = tpu.memref_squeeze %183 : memref<1x1x128xf32, #tpu.memory_space<vmem>> -> memref<128xf32, #tpu.memory_space<vmem>>
      %185 = tpu.memref_slice %arg9[%177] : memref<2x!tpu.dma_semaphore, #tpu.memory_space<semaphore_mem>> -> memref<1x!tpu.dma_semaphore, #tpu.memory_space<semaphore_mem>>
      %186 = tpu.memref_squeeze %185 : memref<1x!tpu.dma_semaphore, #tpu.memory_space<semaphore_mem>> -> memref<!tpu.dma_semaphore, #tpu.memory_space<semaphore_mem>>
      tpu.enqueue_dma source(%182 : memref<128xf32, #tpu.memory_space<any>>) target(%184 : memref<128xf32, #tpu.memory_space<vmem>>) target_semaphore(%186 : memref<!tpu.dma_semaphore, #tpu.memory_space<semaphore_mem>>)
      %c8_i32_85 = arith.constant 8 : i32
      %187 = arith.addi %2, %c8_i32_85 : i32
      %c1_i32_86 = arith.constant 1 : i32
      %188 = arith.subi %c1_i32_86, %12 : i32
      %c6_i32_87 = arith.constant 6 : i32
      %189 = arith.addi %187, %c6_i32_87 : i32
      %190 = arith.index_cast %189 : i32 to index
      %191 = memref.load %arg2[%190] : memref<32xi32, #tpu.memory_space<smem>>
      %c6_i32_88 = arith.constant 6 : i32
      %c0_i32_89 = arith.constant 0 : i32
      %192 = tpu.memref_slice %arg6[%191, %c0_i32_89] : memref<64x128xf32, #tpu.memory_space<any>> -> memref<1x128xf32, #tpu.memory_space<any>>
      %193 = tpu.memref_squeeze %192 : memref<1x128xf32, #tpu.memory_space<any>> -> memref<128xf32, #tpu.memory_space<any>>
      %c0_i32_90 = arith.constant 0 : i32
      %194 = tpu.memref_slice %arg8[%188, %c6_i32_88, %c0_i32_90] : memref<2x8x128xf32, #tpu.memory_space<vmem>> -> memref<1x1x128xf32, #tpu.memory_space<vmem>>
      %195 = tpu.memref_squeeze %194 : memref<1x1x128xf32, #tpu.memory_space<vmem>> -> memref<128xf32, #tpu.memory_space<vmem>>
      %196 = tpu.memref_slice %arg9[%188] : memref<2x!tpu.dma_semaphore, #tpu.memory_space<semaphore_mem>> -> memref<1x!tpu.dma_semaphore, #tpu.memory_space<semaphore_mem>>
      %197 = tpu.memref_squeeze %196 : memref<1x!tpu.dma_semaphore, #tpu.memory_space<semaphore_mem>> -> memref<!tpu.dma_semaphore, #tpu.memory_space<semaphore_mem>>
      tpu.enqueue_dma source(%193 : memref<128xf32, #tpu.memory_space<any>>) target(%195 : memref<128xf32, #tpu.memory_space<vmem>>) target_semaphore(%197 : memref<!tpu.dma_semaphore, #tpu.memory_space<semaphore_mem>>)
      %c8_i32_91 = arith.constant 8 : i32
      %198 = arith.addi %2, %c8_i32_91 : i32
      %c1_i32_92 = arith.constant 1 : i32
      %199 = arith.subi %c1_i32_92, %12 : i32
      %c7_i32_93 = arith.constant 7 : i32
      %200 = arith.addi %198, %c7_i32_93 : i32
      %201 = arith.index_cast %200 : i32 to index
      %202 = memref.load %arg2[%201] : memref<32xi32, #tpu.memory_space<smem>>
      %c7_i32_94 = arith.constant 7 : i32
      %c0_i32_95 = arith.constant 0 : i32
      %203 = tpu.memref_slice %arg6[%202, %c0_i32_95] : memref<64x128xf32, #tpu.memory_space<any>> -> memref<1x128xf32, #tpu.memory_space<any>>
      %204 = tpu.memref_squeeze %203 : memref<1x128xf32, #tpu.memory_space<any>> -> memref<128xf32, #tpu.memory_space<any>>
      %c0_i32_96 = arith.constant 0 : i32
      %205 = tpu.memref_slice %arg8[%199, %c7_i32_94, %c0_i32_96] : memref<2x8x128xf32, #tpu.memory_space<vmem>> -> memref<1x1x128xf32, #tpu.memory_space<vmem>>
      %206 = tpu.memref_squeeze %205 : memref<1x1x128xf32, #tpu.memory_space<vmem>> -> memref<128xf32, #tpu.memory_space<vmem>>
      %207 = tpu.memref_slice %arg9[%199] : memref<2x!tpu.dma_semaphore, #tpu.memory_space<semaphore_mem>> -> memref<1x!tpu.dma_semaphore, #tpu.memory_space<semaphore_mem>>
      %208 = tpu.memref_squeeze %207 : memref<1x!tpu.dma_semaphore, #tpu.memory_space<semaphore_mem>> -> memref<!tpu.dma_semaphore, #tpu.memory_space<semaphore_mem>>
      tpu.enqueue_dma source(%204 : memref<128xf32, #tpu.memory_space<any>>) target(%206 : memref<128xf32, #tpu.memory_space<vmem>>) target_semaphore(%208 : memref<!tpu.dma_semaphore, #tpu.memory_space<semaphore_mem>>)
    } else {
    }
    %c0_i32_8 = arith.constant 0 : i32
    %20 = arith.addi %2, %c0_i32_8 : i32
    %21 = arith.index_cast %20 : i32 to index
    %22 = memref.load %arg2[%21] : memref<32xi32, #tpu.memory_space<smem>>
    %c0_i32_9 = arith.constant 0 : i32
    %c0_i32_10 = arith.constant 0 : i32
    %23 = tpu.memref_slice %arg6[%22, %c0_i32_10] : memref<64x128xf32, #tpu.memory_space<any>> -> memref<1x128xf32, #tpu.memory_space<any>>
    %24 = tpu.memref_squeeze %23 : memref<1x128xf32, #tpu.memory_space<any>> -> memref<128xf32, #tpu.memory_space<any>>
    %c0_i32_11 = arith.constant 0 : i32
    %25 = tpu.memref_slice %arg8[%12, %c0_i32_9, %c0_i32_11] : memref<2x8x128xf32, #tpu.memory_space<vmem>> -> memref<1x1x128xf32, #tpu.memory_space<vmem>>
    %26 = tpu.memref_squeeze %25 : memref<1x1x128xf32, #tpu.memory_space<vmem>> -> memref<128xf32, #tpu.memory_space<vmem>>
    %27 = tpu.memref_slice %arg9[%12] : memref<2x!tpu.dma_semaphore, #tpu.memory_space<semaphore_mem>> -> memref<1x!tpu.dma_semaphore, #tpu.memory_space<semaphore_mem>>
    %28 = tpu.memref_squeeze %27 : memref<1x!tpu.dma_semaphore, #tpu.memory_space<semaphore_mem>> -> memref<!tpu.dma_semaphore, #tpu.memory_space<semaphore_mem>>
    tpu.wait_dma2 semaphore(%28 : memref<!tpu.dma_semaphore, #tpu.memory_space<semaphore_mem>>) src(%24 : memref<128xf32, #tpu.memory_space<any>>) dst(%26 : memref<128xf32, #tpu.memory_space<vmem>>)
    %c1_i32_12 = arith.constant 1 : i32
    %29 = arith.addi %2, %c1_i32_12 : i32
    %30 = arith.index_cast %29 : i32 to index
    %31 = memref.load %arg2[%30] : memref<32xi32, #tpu.memory_space<smem>>
    %c1_i32_13 = arith.constant 1 : i32
    %c0_i32_14 = arith.constant 0 : i32
    %32 = tpu.memref_slice %arg6[%31, %c0_i32_14] : memref<64x128xf32, #tpu.memory_space<any>> -> memref<1x128xf32, #tpu.memory_space<any>>
    %33 = tpu.memref_squeeze %32 : memref<1x128xf32, #tpu.memory_space<any>> -> memref<128xf32, #tpu.memory_space<any>>
    %c0_i32_15 = arith.constant 0 : i32
    %34 = tpu.memref_slice %arg8[%12, %c1_i32_13, %c0_i32_15] : memref<2x8x128xf32, #tpu.memory_space<vmem>> -> memref<1x1x128xf32, #tpu.memory_space<vmem>>
    %35 = tpu.memref_squeeze %34 : memref<1x1x128xf32, #tpu.memory_space<vmem>> -> memref<128xf32, #tpu.memory_space<vmem>>
    %36 = tpu.memref_slice %arg9[%12] : memref<2x!tpu.dma_semaphore, #tpu.memory_space<semaphore_mem>> -> memref<1x!tpu.dma_semaphore, #tpu.memory_space<semaphore_mem>>
    %37 = tpu.memref_squeeze %36 : memref<1x!tpu.dma_semaphore, #tpu.memory_space<semaphore_mem>> -> memref<!tpu.dma_semaphore, #tpu.memory_space<semaphore_mem>>
    tpu.wait_dma2 semaphore(%37 : memref<!tpu.dma_semaphore, #tpu.memory_space<semaphore_mem>>) src(%33 : memref<128xf32, #tpu.memory_space<any>>) dst(%35 : memref<128xf32, #tpu.memory_space<vmem>>)
    %c2_i32_16 = arith.constant 2 : i32
    %38 = arith.addi %2, %c2_i32_16 : i32
    %39 = arith.index_cast %38 : i32 to index
    %40 = memref.load %arg2[%39] : memref<32xi32, #tpu.memory_space<smem>>
    %c2_i32_17 = arith.constant 2 : i32
    %c0_i32_18 = arith.constant 0 : i32
    %41 = tpu.memref_slice %arg6[%40, %c0_i32_18] : memref<64x128xf32, #tpu.memory_space<any>> -> memref<1x128xf32, #tpu.memory_space<any>>
    %42 = tpu.memref_squeeze %41 : memref<1x128xf32, #tpu.memory_space<any>> -> memref<128xf32, #tpu.memory_space<any>>
    %c0_i32_19 = arith.constant 0 : i32
    %43 = tpu.memref_slice %arg8[%12, %c2_i32_17, %c0_i32_19] : memref<2x8x128xf32, #tpu.memory_space<vmem>> -> memref<1x1x128xf32, #tpu.memory_space<vmem>>
    %44 = tpu.memref_squeeze %43 : memref<1x1x128xf32, #tpu.memory_space<vmem>> -> memref<128xf32, #tpu.memory_space<vmem>>
    %45 = tpu.memref_slice %arg9[%12] : memref<2x!tpu.dma_semaphore, #tpu.memory_space<semaphore_mem>> -> memref<1x!tpu.dma_semaphore, #tpu.memory_space<semaphore_mem>>
    %46 = tpu.memref_squeeze %45 : memref<1x!tpu.dma_semaphore, #tpu.memory_space<semaphore_mem>> -> memref<!tpu.dma_semaphore, #tpu.memory_space<semaphore_mem>>
    tpu.wait_dma2 semaphore(%46 : memref<!tpu.dma_semaphore, #tpu.memory_space<semaphore_mem>>) src(%42 : memref<128xf32, #tpu.memory_space<any>>) dst(%44 : memref<128xf32, #tpu.memory_space<vmem>>)
    %c3_i32 = arith.constant 3 : i32
    %47 = arith.addi %2, %c3_i32 : i32
    %48 = arith.index_cast %47 : i32 to index
    %49 = memref.load %arg2[%48] : memref<32xi32, #tpu.memory_space<smem>>
    %c3_i32_20 = arith.constant 3 : i32
    %c0_i32_21 = arith.constant 0 : i32
    %50 = tpu.memref_slice %arg6[%49, %c0_i32_21] : memref<64x128xf32, #tpu.memory_space<any>> -> memref<1x128xf32, #tpu.memory_space<any>>
    %51 = tpu.memref_squeeze %50 : memref<1x128xf32, #tpu.memory_space<any>> -> memref<128xf32, #tpu.memory_space<any>>
    %c0_i32_22 = arith.constant 0 : i32
    %52 = tpu.memref_slice %arg8[%12, %c3_i32_20, %c0_i32_22] : memref<2x8x128xf32, #tpu.memory_space<vmem>> -> memref<1x1x128xf32, #tpu.memory_space<vmem>>
    %53 = tpu.memref_squeeze %52 : memref<1x1x128xf32, #tpu.memory_space<vmem>> -> memref<128xf32, #tpu.memory_space<vmem>>
    %54 = tpu.memref_slice %arg9[%12] : memref<2x!tpu.dma_semaphore, #tpu.memory_space<semaphore_mem>> -> memref<1x!tpu.dma_semaphore, #tpu.memory_space<semaphore_mem>>
    %55 = tpu.memref_squeeze %54 : memref<1x!tpu.dma_semaphore, #tpu.memory_space<semaphore_mem>> -> memref<!tpu.dma_semaphore, #tpu.memory_space<semaphore_mem>>
    tpu.wait_dma2 semaphore(%55 : memref<!tpu.dma_semaphore, #tpu.memory_space<semaphore_mem>>) src(%51 : memref<128xf32, #tpu.memory_space<any>>) dst(%53 : memref<128xf32, #tpu.memory_space<vmem>>)
    %c4_i32 = arith.constant 4 : i32
    %56 = arith.addi %2, %c4_i32 : i32
    %57 = arith.index_cast %56 : i32 to index
    %58 = memref.load %arg2[%57] : memref<32xi32, #tpu.memory_space<smem>>
    %c4_i32_23 = arith.constant 4 : i32
    %c0_i32_24 = arith.constant 0 : i32
    %59 = tpu.memref_slice %arg6[%58, %c0_i32_24] : memref<64x128xf32, #tpu.memory_space<any>> -> memref<1x128xf32, #tpu.memory_space<any>>
    %60 = tpu.memref_squeeze %59 : memref<1x128xf32, #tpu.memory_space<any>> -> memref<128xf32, #tpu.memory_space<any>>
    %c0_i32_25 = arith.constant 0 : i32
    %61 = tpu.memref_slice %arg8[%12, %c4_i32_23, %c0_i32_25] : memref<2x8x128xf32, #tpu.memory_space<vmem>> -> memref<1x1x128xf32, #tpu.memory_space<vmem>>
    %62 = tpu.memref_squeeze %61 : memref<1x1x128xf32, #tpu.memory_space<vmem>> -> memref<128xf32, #tpu.memory_space<vmem>>
    %63 = tpu.memref_slice %arg9[%12] : memref<2x!tpu.dma_semaphore, #tpu.memory_space<semaphore_mem>> -> memref<1x!tpu.dma_semaphore, #tpu.memory_space<semaphore_mem>>
    %64 = tpu.memref_squeeze %63 : memref<1x!tpu.dma_semaphore, #tpu.memory_space<semaphore_mem>> -> memref<!tpu.dma_semaphore, #tpu.memory_space<semaphore_mem>>
    tpu.wait_dma2 semaphore(%64 : memref<!tpu.dma_semaphore, #tpu.memory_space<semaphore_mem>>) src(%60 : memref<128xf32, #tpu.memory_space<any>>) dst(%62 : memref<128xf32, #tpu.memory_space<vmem>>)
    %c5_i32 = arith.constant 5 : i32
    %65 = arith.addi %2, %c5_i32 : i32
    %66 = arith.index_cast %65 : i32 to index
    %67 = memref.load %arg2[%66] : memref<32xi32, #tpu.memory_space<smem>>
    %c5_i32_26 = arith.constant 5 : i32
    %c0_i32_27 = arith.constant 0 : i32
    %68 = tpu.memref_slice %arg6[%67, %c0_i32_27] : memref<64x128xf32, #tpu.memory_space<any>> -> memref<1x128xf32, #tpu.memory_space<any>>
    %69 = tpu.memref_squeeze %68 : memref<1x128xf32, #tpu.memory_space<any>> -> memref<128xf32, #tpu.memory_space<any>>
    %c0_i32_28 = arith.constant 0 : i32
    %70 = tpu.memref_slice %arg8[%12, %c5_i32_26, %c0_i32_28] : memref<2x8x128xf32, #tpu.memory_space<vmem>> -> memref<1x1x128xf32, #tpu.memory_space<vmem>>
    %71 = tpu.memref_squeeze %70 : memref<1x1x128xf32, #tpu.memory_space<vmem>> -> memref<128xf32, #tpu.memory_space<vmem>>
    %72 = tpu.memref_slice %arg9[%12] : memref<2x!tpu.dma_semaphore, #tpu.memory_space<semaphore_mem>> -> memref<1x!tpu.dma_semaphore, #tpu.memory_space<semaphore_mem>>
    %73 = tpu.memref_squeeze %72 : memref<1x!tpu.dma_semaphore, #tpu.memory_space<semaphore_mem>> -> memref<!tpu.dma_semaphore, #tpu.memory_space<semaphore_mem>>
    tpu.wait_dma2 semaphore(%73 : memref<!tpu.dma_semaphore, #tpu.memory_space<semaphore_mem>>) src(%69 : memref<128xf32, #tpu.memory_space<any>>) dst(%71 : memref<128xf32, #tpu.memory_space<vmem>>)
    %c6_i32 = arith.constant 6 : i32
    %74 = arith.addi %2, %c6_i32 : i32
    %75 = arith.index_cast %74 : i32 to index
    %76 = memref.load %arg2[%75] : memref<32xi32, #tpu.memory_space<smem>>
    %c6_i32_29 = arith.constant 6 : i32
    %c0_i32_30 = arith.constant 0 : i32
    %77 = tpu.memref_slice %arg6[%76, %c0_i32_30] : memref<64x128xf32, #tpu.memory_space<any>> -> memref<1x128xf32, #tpu.memory_space<any>>
    %78 = tpu.memref_squeeze %77 : memref<1x128xf32, #tpu.memory_space<any>> -> memref<128xf32, #tpu.memory_space<any>>
    %c0_i32_31 = arith.constant 0 : i32
    %79 = tpu.memref_slice %arg8[%12, %c6_i32_29, %c0_i32_31] : memref<2x8x128xf32, #tpu.memory_space<vmem>> -> memref<1x1x128xf32, #tpu.memory_space<vmem>>
    %80 = tpu.memref_squeeze %79 : memref<1x1x128xf32, #tpu.memory_space<vmem>> -> memref<128xf32, #tpu.memory_space<vmem>>
    %81 = tpu.memref_slice %arg9[%12] : memref<2x!tpu.dma_semaphore, #tpu.memory_space<semaphore_mem>> -> memref<1x!tpu.dma_semaphore, #tpu.memory_space<semaphore_mem>>
    %82 = tpu.memref_squeeze %81 : memref<1x!tpu.dma_semaphore, #tpu.memory_space<semaphore_mem>> -> memref<!tpu.dma_semaphore, #tpu.memory_space<semaphore_mem>>
    tpu.wait_dma2 semaphore(%82 : memref<!tpu.dma_semaphore, #tpu.memory_space<semaphore_mem>>) src(%78 : memref<128xf32, #tpu.memory_space<any>>) dst(%80 : memref<128xf32, #tpu.memory_space<vmem>>)
    %c7_i32 = arith.constant 7 : i32
    %83 = arith.addi %2, %c7_i32 : i32
    %84 = arith.index_cast %83 : i32 to index
    %85 = memref.load %arg2[%84] : memref<32xi32, #tpu.memory_space<smem>>
    %c7_i32_32 = arith.constant 7 : i32
    %c0_i32_33 = arith.constant 0 : i32
    %86 = tpu.memref_slice %arg6[%85, %c0_i32_33] : memref<64x128xf32, #tpu.memory_space<any>> -> memref<1x128xf32, #tpu.memory_space<any>>
    %87 = tpu.memref_squeeze %86 : memref<1x128xf32, #tpu.memory_space<any>> -> memref<128xf32, #tpu.memory_space<any>>
    %c0_i32_34 = arith.constant 0 : i32
    %88 = tpu.memref_slice %arg8[%12, %c7_i32_32, %c0_i32_34] : memref<2x8x128xf32, #tpu.memory_space<vmem>> -> memref<1x1x128xf32, #tpu.memory_space<vmem>>
    %89 = tpu.memref_squeeze %88 : memref<1x1x128xf32, #tpu.memory_space<vmem>> -> memref<128xf32, #tpu.memory_space<vmem>>
    %90 = tpu.memref_slice %arg9[%12] : memref<2x!tpu.dma_semaphore, #tpu.memory_space<semaphore_mem>> -> memref<1x!tpu.dma_semaphore, #tpu.memory_space<semaphore_mem>>
    %91 = tpu.memref_squeeze %90 : memref<1x!tpu.dma_semaphore, #tpu.memory_space<semaphore_mem>> -> memref<!tpu.dma_semaphore, #tpu.memory_space<semaphore_mem>>
    tpu.wait_dma2 semaphore(%91 : memref<!tpu.dma_semaphore, #tpu.memory_space<semaphore_mem>>) src(%87 : memref<128xf32, #tpu.memory_space<any>>) dst(%89 : memref<128xf32, #tpu.memory_space<vmem>>)
    %92 = arith.index_cast %12 : i32 to index
    %c0 = arith.constant 0 : index
    %c0_35 = arith.constant 0 : index
    %93 = vector.load %arg8[%92, %c0, %c0_35] : memref<2x8x128xf32, #tpu.memory_space<vmem>>, vector<1x8x128xf32>
    %94 = vector.shape_cast %93 : vector<1x8x128xf32> to vector<8x128xf32>
    %c0_36 = arith.constant 0 : index
    %c0_37 = arith.constant 0 : index
    %95 = vector.load %arg3[%c0_36, %c0_37] : memref<8x128xf32, #tpu.memory_space<vmem>>, vector<8x128xf32>
    %96 = arith.addf %94, %95 : vector<8x128xf32>
    %cst = arith.constant dense<0.000000e+00> : vector<8xf32>
    %97 = vector.multi_reduction <add>, %96, %cst [1] : vector<8x128xf32> to vector<8xf32>
    %98 = vector.shape_cast %97 : vector<8xf32> to vector<8x1xf32>
    %cst_38 = arith.constant 1.280000e+02 : f32
    %99 = vector.broadcast %cst_38 : f32 to vector<8x1xf32>
    %100 = arith.divf %98, %99 : vector<8x1xf32>
    %101 = vector.broadcast %100 : vector<8x1xf32> to vector<8x128xf32>
    %102 = arith.subf %96, %101 : vector<8x128xf32>
    %103 = arith.mulf %102, %102 : vector<8x128xf32>
    %cst_39 = arith.constant dense<0.000000e+00> : vector<8xf32>
    %104 = vector.multi_reduction <add>, %103, %cst_39 [1] : vector<8x128xf32> to vector<8xf32>
    %105 = vector.shape_cast %104 : vector<8xf32> to vector<8x1xf32>
    %cst_40 = arith.constant 1.280000e+02 : f32
    %106 = vector.broadcast %cst_40 : f32 to vector<8x1xf32>
    %107 = arith.divf %105, %106 : vector<8x1xf32>
    %cst_41 = arith.constant 9.99999974E-6 : f32
    %108 = vector.broadcast %cst_41 : f32 to vector<8x1xf32>
    %109 = arith.addf %107, %108 : vector<8x1xf32>
    %110 = math.rsqrt %109 : vector<8x1xf32>
    %111 = vector.broadcast %110 : vector<8x1xf32> to vector<8x128xf32>
    %112 = arith.mulf %102, %111 : vector<8x128xf32>
    %c0_42 = arith.constant 0 : index
    %c0_43 = arith.constant 0 : index
    %113 = vector.load %arg4[%c0_42, %c0_43] : memref<1x128xf32, #tpu.memory_space<vmem>>, vector<1x128xf32>
    %114 = vector.broadcast %113 : vector<1x128xf32> to vector<8x128xf32>
    %115 = arith.mulf %112, %114 : vector<8x128xf32>
    %c0_44 = arith.constant 0 : index
    %c0_45 = arith.constant 0 : index
    %116 = vector.load %arg5[%c0_44, %c0_45] : memref<1x128xf32, #tpu.memory_space<vmem>>, vector<1x128xf32>
    %117 = vector.broadcast %116 : vector<1x128xf32> to vector<8x128xf32>
    %118 = arith.addf %115, %117 : vector<8x128xf32>
    %119 = vector.shape_cast %118 : vector<8x128xf32> to vector<1x8x128xf32>
    %c0_46 = arith.constant 0 : index
    %c0_47 = arith.constant 0 : index
    %c0_48 = arith.constant 0 : index
    %120 = vector.load %arg7[%c0_46, %c0_47, %c0_48] : memref<1x8x128xf32, #tpu.memory_space<vmem>>, vector<1x8x128xf32>
    tpu.vector_store %arg7[%c0_46, %c0_47, %c0_48], %119 {strides = array<i32>} : memref<1x8x128xf32, #tpu.memory_space<vmem>>, vector<1x8x128xf32>,
    return
  }
  func.func @transform_0(%arg0: i32, %arg1: i32, %arg2: memref<32xi32, #tpu.memory_space<smem>>) -> (i32, i32) {
    %c0_i32 = arith.constant 0 : i32
    %c0_i32_0 = arith.constant 0 : i32
    return %arg1, %c0_i32 : i32, i32
  }
  func.func @transform_1(%arg0: i32, %arg1: i32, %arg2: memref<32xi32, #tpu.memory_space<smem>>) -> (i32, i32) {
    %c0_i32 = arith.constant 0 : i32
    %c0_i32_0 = arith.constant 0 : i32
    %c0_i32_1 = arith.constant 0 : i32
    return %c0_i32, %c0_i32_0 : i32, i32
  }
  func.func @transform_2(%arg0: i32, %arg1: i32, %arg2: memref<32xi32, #tpu.memory_space<smem>>) -> (i32, i32) {
    %c0_i32 = arith.constant 0 : i32
    %c0_i32_0 = arith.constant 0 : i32
    %c0_i32_1 = arith.constant 0 : i32
    return %c0_i32, %c0_i32_0 : i32, i32
  }
  func.func @transform_4(%arg0: i32, %arg1: i32, %arg2: memref<32xi32, #tpu.memory_space<smem>>) -> (i32, i32, i32) {
    %c0_i32 = arith.constant 0 : i32
    %c0_i32_0 = arith.constant 0 : i32
    return %arg0, %arg1, %c0_i32 : i32, i32, i32
  }
}

</mosaic_0001>

<llo_original>
// kernel: tpu_custom_call.1
$region0: #{tpu_custom_call.1}
  #allocation0 [shape = 'u32[]', space=smem, size = 0x4, offset = 0x4, fixed_abs, tag = 'smem constant byte address 0x4 - core index']
  #allocation1 [shape = 'u32[144,128]{1,0:T(1,128)}', space=vmem, size = 0x12000, scoped, tag = 'internal scratch']
  #allocation2 [shape = 'f32[2,8,128]{2,1,0:T(8,128)}', space=vmem, size = 0x2000, scoped, tag = 'scratch operand']
  #allocation3 [shape = 's32[2]{0}', space=sflag, size = 0x8, scoped, tag = 'scratch operand']
  #allocation4 [shape = 's32[1]{0}', space=sflag, size = 0x4, scoped, tag = 'scoped memory for tpu_custom_call.1']
  #allocation5 [shape = 'u8[512]{0}', space=smem, size = 0x200, scoped, tag = 'prefetched SMEM operand 0']
  #allocation10 [shape = 's32[]', space=sflag, size = 0x4, offset = 0, fixed_abs, tag = 'sflag constant byte address 0x0 - dummy sync flag']
  #allocation11 [shape = 's32[]', space=sflag, size = 0x4, offset = 0, fixed_abs, tag = 'sflag constant byte address 0x0 - dummy sync flag']
  #allocation12 [shape = 'u32[]', space=smem, size = 0x4, offset = 0x44, fixed_abs, tag = 'smem constant byte address 0x44 - assertion arg 0']
  #allocation13 [shape = 'u32[]', space=smem, size = 0x4, offset = 0x48, fixed_abs, tag = 'smem constant byte address 0x48 - assertion arg 1']
  #allocation14 [shape = 's32[]', space=sflag, size = 0x4, offset = 0, fixed_abs, tag = 'sflag constant byte address 0x0 - dummy sync flag']
  #allocation15 [shape = 's32[]', space=sflag, size = 0x4, offset = 0, fixed_abs, tag = 'sflag constant byte address 0x0 - dummy sync flag']
  #allocation16 [shape = 's32[]', space=sflag, size = 0x4, offset = 0, fixed_abs, tag = 'sflag constant byte address 0x0 - dummy sync flag']
  #allocation17 [shape = 's32[]', space=sflag, size = 0x4, offset = 0, fixed_abs, tag = 'sflag constant byte address 0x0 - dummy sync flag']
  #allocation18 [shape = 's32[]', space=sflag, size = 0x4, offset = 0, fixed_abs, tag = 'sflag constant byte address 0x0 - dummy sync flag']
  #allocation19 [shape = 's32[]', space=sflag, size = 0x4, offset = 0, fixed_abs, tag = 'sflag constant byte address 0x0 - dummy sync flag']
  #allocation20 [shape = 's32[]', space=sflag, size = 0x4, offset = 0, fixed_abs, tag = 'sflag constant byte address 0x0 - dummy sync flag']
  #allocation21 [shape = 's32[]', space=sflag, size = 0x4, offset = 0, fixed_abs, tag = 'sflag constant byte address 0x0 - dummy sync flag']
  #allocation22 [shape = 's32[]', space=sflag, size = 0x4, offset = 0, fixed_abs, tag = 'sflag constant byte address 0x0 - dummy sync flag']
  #allocation23 [shape = 's32[]', space=sflag, size = 0x4, offset = 0, fixed_abs, tag = 'sflag constant byte address 0x0 - dummy sync flag']
  #allocation24 [shape = 's32[]', space=sflag, size = 0x4, offset = 0, fixed_abs, tag = 'sflag constant byte address 0x0 - dummy sync flag']
  #allocation25 [shape = 's32[]', space=sflag, size = 0x4, offset = 0, fixed_abs, tag = 'sflag constant byte address 0x0 - dummy sync flag']
  #allocation26 [shape = 's32[]', space=sflag, size = 0x4, offset = 0, fixed_abs, tag = 'sflag constant byte address 0x0 - dummy sync flag']
  #allocation27 [shape = 's32[]', space=sflag, size = 0x4, offset = 0, fixed_abs, tag = 'sflag constant byte address 0x0 - dummy sync flag']
  #allocation28 [shape = 's32[]', space=sflag, size = 0x4, offset = 0, fixed_abs, tag = 'sflag constant byte address 0x0 - dummy sync flag']
  #allocation29 [shape = 's32[]', space=sflag, size = 0x4, offset = 0, fixed_abs, tag = 'sflag constant byte address 0x0 - dummy sync flag']
  #allocation30 [shape = 's32[]', space=sflag, size = 0x4, offset = 0, fixed_abs, tag = 'sflag constant byte address 0x0 - dummy sync flag']
  #allocation31 [shape = 's32[]', space=sflag, size = 0x4, offset = 0, fixed_abs, tag = 'sflag constant byte address 0x0 - dummy sync flag']
  #allocation32 [shape = 's32[]', space=sflag, size = 0x4, offset = 0, fixed_abs, tag = 'sflag constant byte address 0x0 - dummy sync flag']
  #allocation33 [shape = 's32[]', space=sflag, size = 0x4, offset = 0, fixed_abs, tag = 'sflag constant byte address 0x0 - dummy sync flag']
  #allocation34 [shape = 's32[]', space=sflag, size = 0x4, offset = 0, fixed_abs, tag = 'sflag constant byte address 0x0 - dummy sync flag']
  #allocation35 [shape = 's32[]', space=sflag, size = 0x4, offset = 0, fixed_abs, tag = 'sflag constant byte address 0x0 - dummy sync flag']
  #allocation36 [shape = 's32[]', space=sflag, size = 0x4, offset = 0, fixed_abs, tag = 'sflag constant byte address 0x0 - dummy sync flag']
  #allocation37 [shape = 's32[]', space=sflag, size = 0x4, offset = 0, fixed_abs, tag = 'sflag constant byte address 0x0 - dummy sync flag']
  #allocation38 [shape = 's32[]', space=sflag, size = 0x4, offset = 0, fixed_abs, tag = 'sflag constant byte address 0x0 - dummy sync flag']
  #allocation39 [shape = 's32[]', space=sflag, size = 0x4, offset = 0, fixed_abs, tag = 'sflag constant byte address 0x0 - dummy sync flag']
  #allocation40 [shape = 's32[]', space=sflag, size = 0x4, offset = 0, fixed_abs, tag = 'sflag constant byte address 0x0 - dummy sync flag']
  #allocation41 [shape = 's32[]', space=sflag, size = 0x4, offset = 0, fixed_abs, tag = 'sflag constant byte address 0x0 - dummy sync flag']
  #allocation42 [shape = 's32[]', space=sflag, size = 0x4, offset = 0, fixed_abs, tag = 'sflag constant byte address 0x0 - dummy sync flag']
  #allocation43 [shape = 's32[]', space=sflag, size = 0x4, offset = 0, fixed_abs, tag = 'sflag constant byte address 0x0 - dummy sync flag']
  %s0 = inlined_call_operand.hbm [shape: s32[32], index: 0, kind: input, shape index: {}]
  %s1 = inlined_call_operand.hbm [shape: f32[32,128], index: 1, kind: input, shape index: {}]
  %s2 = inlined_call_operand.vmem [shape: f32[1,128], index: 2, kind: input, shape index: {}]
  %s3 = inlined_call_operand.vmem [shape: f32[1,128], index: 3, kind: input, shape index: {}]
  %s4 = inlined_call_operand.hbm [shape: f32[64,128], index: 4, kind: input, shape index: {}]
  %s5 = inlined_call_operand.hbm [shape: f32[2,16,128], index: 5, kind: output, shape index: {}]
  %s6 = sld [smem:[#allocation0]]
  $region121: #{tpu_custom_call.1} parent=0
    _
  %s8 = ssub.s32 1, %s6
  %s9 = scalar_select 0, %s8, %s6
  %11 = dma.hbm_to_smem %s0, 16, [#allocation5], [#allocation4]
  %12 = dma.done [#allocation4], 16
  %13 = sfence
  $region1: #{tpu_custom_call.1} parent=0
    #allocation6 [shape = 'u8[8192]{0}', space=vmem, size = 0x2000, scoped, tag = 'input window, operand 1']
    #allocation7 [shape = 's32[2]{0}', space=sflag, size = 0x8, scoped, tag = 'scoped memory for tpu_custom_call.1']
    #allocation8 [shape = 's32[2]{0}', space=sflag, size = 0x8, scoped, tag = 'scoped memory for tpu_custom_call.1']
    #allocation9 [shape = 'u8[8192]{0}', space=vmem, size = 0x2000, scoped, tag = 'output window, operand 0']
    %14 = vsyncpa [#allocation7], 0
    %s15 = scalar_lea.sflag [#allocation7], 1
    %16 = vsyncpa %s15, 0
    %17 = vsyncpa [#allocation8], 0
    %s18 = scalar_lea.sflag [#allocation8], 1
    %19 = vsyncpa %s18, 0
    loop: start=0, step=1, limit=6
    $region2: #{tpu_custom_call.1} parent=1 // loop_pre_header
      _
    $region3: #{tpu_custom_call.1} parent=1 // loop_header
      %s21 = sphi 0, %s25
      %p22 = scmp.ge.s32.totalorder %s21, 6
      %s28 = sphi 0, %s40
      %s29 = sphi 0, %s36
      %s30 = sphi 0, %s28
      %s31 = sphi 0, %s29
      %s32 = sphi 0, %s30
      %s33 = sphi 0, %s31
      %s43 = sphi 0, %s45
      %s46 = sphi 0, %s43
      %s47 = sphi 0, %s46
      %s63 = sphi 0, %s47
      %s67 = sphi 0, %s67
      %s69 = sphi 0, %s67
      %s70 = sphi 0, %s69
      %s84 = sphi 0, %s70
      %s88 = sphi 0, %s88
      %s90 = sphi 0, %s88
      %s91 = sphi 0, %s90
      %s105 = sphi 0, %s91
      %s113 = sphi 0, %s115
      %s116 = sphi 0, %s113
      %s117 = sphi 0, %s116
      %s133 = sphi 0, %s117
    $region4: #{tpu_custom_call.1} parent=1 // loop_header_branch
      %24 = sbr.rel (%p22) target = $region8
    $region5: #{tpu_custom_call.1} parent=1 // loop_body
      %s26 = ssub.s32 %s21, 1
      %s27 = ssub.s32 %s21, 2
      %s34 = sadd.s32 1, %s29
      %p35 = scmp.ge.s32.totalorder %s34, 2
      %s36 = scalar_select %p35, 0, %s34
      %s37 = sadd.s32 1, %s28
      %s38 = scalar_select %p35, %s37, %s28
      %p39 = scmp.ge.s32.totalorder %s38, 2
      %s40 = scalar_select %p39, 0, %s38
      %s41 = ssub.s32 %s29, %s36
      %p42 = scmp.eq.s32.totalorder %s41, 0
      %s44 = sadd.s32 %s43, 1
      %s45 = scalar_select %p42, %s43, %s44
      %p48 = pneg %p42
      %p49 = scmp.eq.s32.totalorder %s21, 3
      %p50 = por %p48, %p49
      %p51 = scmp.ne.s32.totalorder %s43, %s46
      %p52 = scmp.eq.s32.totalorder %s21, 0
      %p53 = por %p51, %p52
      %p54 = scmp.ne.s32.totalorder %s43, %s46
      %p55 = scmp.eq.s32.totalorder %s26, 3
      %p56 = por %p54, %p55
      %p57 = scmp.ne.s32.totalorder %s46, %s47
      %p58 = scmp.eq.s32.totalorder %s26, 0
      %p59 = por %p57, %p58
      %p60 = scmp.ne.s32.totalorder %s46, %s47
      %p61 = scmp.eq.s32.totalorder %s27, 3
      %p62 = por %p60, %p61
      %p64 = scmp.ne.s32.totalorder %s47, %s63
      %p65 = scmp.eq.s32.totalorder %s27, 0
      %p66 = por %p64, %p65
      %s68 = sadd.s32 %s67, 1
      %p71 = scmp.eq.s32.totalorder %s21, 3
      %p72 = scmp.ne.s32.totalorder %s67, %s69
      %p73 = scmp.eq.s32.totalorder %s21, 0
      %p74 = por %p72, %p73
      %p75 = scmp.ne.s32.totalorder %s67, %s69
      %p76 = scmp.eq.s32.totalorder %s26, 3
      %p77 = por %p75, %p76
      %p78 = scmp.ne.s32.totalorder %s69, %s70
      %p79 = scmp.eq.s32.totalorder %s26, 0
      %p80 = por %p78, %p79
      %p81 = scmp.ne.s32.totalorder %s69, %s70
      %p82 = scmp.eq.s32.totalorder %s27, 3
      %p83 = por %p81, %p82
      %p85 = scmp.ne.s32.totalorder %s70, %s84
      %p86 = scmp.eq.s32.totalorder %s27, 0
      %p87 = por %p85, %p86
      %s89 = sadd.s32 %s88, 1
      %p92 = scmp.eq.s32.totalorder %s21, 3
      %p93 = scmp.ne.s32.totalorder %s88, %s90
      %p94 = scmp.eq.s32.totalorder %s21, 0
      %p95 = por %p93, %p94
      %p96 = scmp.ne.s32.totalorder %s88, %s90
      %p97 = scmp.eq.s32.totalorder %s26, 3
      %p98 = por %p96, %p97
      %p99 = scmp.ne.s32.totalorder %s90, %s91
      %p100 = scmp.eq.s32.totalorder %s26, 0
      %p101 = por %p99, %p100
      %p102 = scmp.ne.s32.totalorder %s90, %s91
      %p103 = scmp.eq.s32.totalorder %s27, 3
      %p104 = por %p102, %p103
      %p106 = scmp.ne.s32.totalorder %s91, %s105
      %p107 = scmp.eq.s32.totalorder %s27, 0
      %p108 = por %p106, %p107
      %s109 = ssub.s32 %s28, %s40
      %s110 = ssub.s32 %s29, %s36
      %s111 = sor.u32 %s109, %s110
      %p112 = scmp.eq.s32.totalorder %s111, 0
      %s114 = sadd.s32 %s113, 1
      %s115 = scalar_select %p112, %s113, %s114
      %p118 = pneg %p112
      %p119 = scmp.eq.s32.totalorder %s21, 3
      %p120 = por %p118, %p119
      %p121 = scmp.ne.s32.totalorder %s113, %s116
      %p122 = scmp.eq.s32.totalorder %s21, 0
      %p123 = por %p121, %p122
      %p124 = scmp.ne.s32.totalorder %s113, %s116
      %p125 = scmp.eq.s32.totalorder %s26, 3
      %p126 = por %p124, %p125
      %p127 = scmp.ne.s32.totalorder %s116, %s117
      %p128 = scmp.eq.s32.totalorder %s26, 0
      %p129 = por %p127, %p128
      %p130 = scmp.ne.s32.totalorder %s116, %s117
      %p131 = scmp.eq.s32.totalorder %s27, 3
      %p132 = por %p130, %p131
      %p134 = scmp.ne.s32.totalorder %s117, %s133
      %p135 = scmp.eq.s32.totalorder %s27, 0
      %p136 = por %p134, %p135
      %p137 = scmp.le.s32.totalorder 1, %s21
      %p138 = scmp.lt.s32.totalorder %s21, 5
      %p139 = pnand %p137, %p138
      %p140 = pneg %p139
      // Predicated region
      $region9: #{tpu_custom_call.1} parent=5 // pred_check
        _
      $region10: #{tpu_custom_call.1} parent=5 // pred_check_branch
        %142 = sbr.rel (%p139) target = $region12
      $region11: #{tpu_custom_call.1} parent=5 // pred_region
        %s143 = ssub.s32 %s21, 1
        // Predicated region
        $region13: #{tpu_custom_call.1} parent=11 // pred_check
          %p144 = pneg %p80
        $region14: #{tpu_custom_call.1} parent=11 // pred_check_branch
          %146 = sbr.rel (%p144) target = $region16
        $region15: #{tpu_custom_call.1} parent=11 // pred_region
          _
        $region16: #{tpu_custom_call.1} parent=11 // pred_fallthru
          _
        // Predicated region
        $region17: #{tpu_custom_call.1} parent=11 // pred_check
          %p147 = pneg %p101
        $region18: #{tpu_custom_call.1} parent=11 // pred_check_branch
          %149 = sbr.rel (%p147) target = $region20
        $region19: #{tpu_custom_call.1} parent=11 // pred_region
          _
        $region20: #{tpu_custom_call.1} parent=11 // pred_fallthru
          _
      $region12: #{tpu_custom_call.1} parent=5 // pred_fallthru
        _
      %p150 = scmp.lt.s32.totalorder %s21, 4
      // Predicated region
      $region21: #{tpu_custom_call.1} parent=5 // pred_check
        %p151 = pneg %p150
      $region22: #{tpu_custom_call.1} parent=5 // pred_check_branch
        %153 = sbr.rel (%p151) target = $region24
      $region23: #{tpu_custom_call.1} parent=5 // pred_region
        // Predicated region
        $region25: #{tpu_custom_call.1} parent=23 // pred_check
          %p154 = pneg %p53
        $region26: #{tpu_custom_call.1} parent=23 // pred_check_branch
          %156 = sbr.rel (%p154) target = $region28
        $region27: #{tpu_custom_call.1} parent=23 // pred_region
          %s157 = sand.u32 %s43, 1
          %s158 = scalar_lea.sflag [#allocation7], %s157
          %s159 = sand.u32 %s43, 1
          %s160 = smul.addr %s159, 8
          %s161 = scalar_lea.vmem [#allocation6], %s160
          %s163 = ssub.s32 128, 128
          %164 = vsyncadd %s158, %s163
          %s165 = smul.addr %s29, 128
          %s166 = scalar_lea.hbm %s1, %s165
          %s168 = sshll.u32 %s161, 4
          %s169 = int_to_ptr.vmem [resolvable:$true] %s168
          %171 = dma.hbm_to_vmem [thread:$0]  %s166, 128, %s169, %s158
        $region28: #{tpu_custom_call.1} parent=23 // pred_fallthru
          _
      $region24: #{tpu_custom_call.1} parent=5 // pred_fallthru
        _
      %p172 = scmp.le.s32.totalorder 1, %s21
      %p173 = scmp.lt.s32.totalorder %s21, 5
      %p174 = pnand %p172, %p173
      %p175 = pneg %p174
      // Predicated region
      $region29: #{tpu_custom_call.1} parent=5 // pred_check
        _
      $region30: #{tpu_custom_call.1} parent=5 // pred_check_branch
        %177 = sbr.rel (%p174) target = $region32
      $region31: #{tpu_custom_call.1} parent=5 // pred_region
        %s178 = ssub.s32 %s21, 1
        %s179 = sand.u32 %s46, 1
        %s180 = scalar_lea.sflag [#allocation7], %s179
        %s181 = sand.u32 %s46, 1
        %s182 = smul.addr %s181, 8
        %s183 = scalar_lea.vmem [#allocation6], %s182
        // Predicated region
        $region33: #{tpu_custom_call.1} parent=31 // pred_check
          %p184 = pneg %p59
        $region34: #{tpu_custom_call.1} parent=31 // pred_check_branch
          %186 = sbr.rel (%p184) target = $region36
        $region35: #{tpu_custom_call.1} parent=31 // pred_region
          %187 = dma.done %s180, 128
        $region36: #{tpu_custom_call.1} parent=31 // pred_fallthru
          _
        %s188 = sand.u32 %s46, 1
        %s189 = scalar_lea.sflag [#allocation7], %s188
        %s190 = sand.u32 %s46, 1
        %s191 = smul.addr %s190, 8
        %s192 = scalar_lea.vmem [#allocation6], %s191
        %p193 = pneg %p59
        %p194 = pneg %p56
        %p195 = pneg %p80
        %p196 = pneg %p77
        %p197 = pneg %p101
        %p198 = pneg %p98
        %p199 = pneg %p129
        %p200 = pneg %p126
        %s201 = sand.u32 %s116, 1
        %s202 = scalar_lea.sflag [#allocation8], %s201
        %s203 = sand.u32 %s116, 1
        %s204 = smul.addr %s203, 8
        %s205 = scalar_lea.vmem [#allocation9], %s204
        %s206 = smul.u32 %s30, 16
        %s207 = smul.u32 %s31, 8
        %s208 = sadd.s32 %s206, %s207
        %p209 = scmp.lt.s32.totalorder %s31, 0
        %s210 = ssub.s32 0, %s31
        %s211 = scalar_select %p209, %s210, %s31
        %s212 = sand.u32 %s211, 1
        %s213 = ssub.s32 0, %s212
        %s214 = scalar_select %p209, %s213, %s212
        %p215 = scmp.ne.s32.totalorder %s214, 0
        %p216 = scmp.lt.s32.totalorder %s214, 0
        %p217 = pnand %p216, %p215
        %p218 = pneg %p217
        %s219 = sadd.s32 %s214, 2
        %s220 = scalar_select %p218, %s219, %s214
        %p221 = scmp.eq.s32.totalorder %s31, 0
        // Predicated region
        $region37: #{tpu_custom_call.1} parent=31 // pred_check
          %p222 = pneg %p221
        $region38: #{tpu_custom_call.1} parent=31 // pred_check_branch
          %224 = sbr.rel (%p222) target = $region40
        $region39: #{tpu_custom_call.1} parent=31 // pred_region
          %s225 = sld [smem:[#allocation5 + %s208]]
          %s226 = smul.addr %s225, 16
          %s227 = scalar_lea.hbm %s4, %s226
          %s228 = smul.u32 %s220, 8
          %s229 = scalar_lea.vmem [#allocation2], %s228
          %s230 = scalar_lea.sflag [#allocation3], %s220
          // Predicated region
          $region41: #{tpu_custom_call.1} parent=39 // pred_check
            _
          $region42: #{tpu_custom_call.1} parent=39 // pred_check_branch
            %232 = sbr.rel target = $region44
          $region43: #{tpu_custom_call.1} parent=39 // pred_region
            %233 = sst [smem:[#allocation12]] [#allocation11]
            %234 = sst [smem:[#allocation13]] [#allocation10]
          $region44: #{tpu_custom_call.1} parent=39 // pred_fallthru
            _
          %236 = shalt.err (0)
          %s238 = sshll.u32 %s229, 4
          %s239 = int_to_ptr.vmem [resolvable:$true] %s238
          %241 = dma.hbm_to_vmem [thread:$0]  %s227, 16, %s239, %s230
          %s242 = sadd.s32 %s208, 1
          %s243 = sld [smem:[#allocation5 + %s242]]
          %s244 = smul.addr %s243, 16
          %s245 = scalar_lea.hbm %s4, %s244
          %s246 = sadd.s32 1, %s228
          %s247 = scalar_lea.vmem [#allocation2], %s246
          // Predicated region
          $region45: #{tpu_custom_call.1} parent=39 // pred_check
            _
          $region46: #{tpu_custom_call.1} parent=39 // pred_check_branch
            %249 = sbr.rel target = $region48
          $region47: #{tpu_custom_call.1} parent=39 // pred_region
            %250 = sst [smem:[#allocation12]] [#allocation15]
            %251 = sst [smem:[#allocation13]] [#allocation14]
          $region48: #{tpu_custom_call.1} parent=39 // pred_fallthru
            _
          %253 = shalt.err (0)
          %s255 = sshll.u32 %s247, 4
          %s256 = int_to_ptr.vmem [resolvable:$true] %s255
          %258 = dma.hbm_to_vmem [thread:$0]  %s245, 16, %s256, %s230
          %s259 = sadd.s32 %s208, 2
          %s260 = sld [smem:[#allocation5 + %s259]]
          %s261 = smul.addr %s260, 16
          %s262 = scalar_lea.hbm %s4, %s261
          %s263 = sadd.s32 2, %s228
          %s264 = scalar_lea.vmem [#allocation2], %s263
          // Predicated region
          $region49: #{tpu_custom_call.1} parent=39 // pred_check
            _
          $region50: #{tpu_custom_call.1} parent=39 // pred_check_branch
            %266 = sbr.rel target = $region52
          $region51: #{tpu_custom_call.1} parent=39 // pred_region
            %267 = sst [smem:[#allocation12]] [#allocation17]
            %268 = sst [smem:[#allocation13]] [#allocation16]
          $region52: #{tpu_custom_call.1} parent=39 // pred_fallthru
            _
          %270 = shalt.err (0)
          %s272 = sshll.u32 %s264, 4
          %s273 = int_to_ptr.vmem [resolvable:$true] %s272
          %275 = dma.hbm_to_vmem [thread:$0]  %s262, 16, %s273, %s230
          %s276 = sadd.s32 %s208, 3
          %s277 = sld [smem:[#allocation5 + %s276]]
          %s278 = smul.addr %s277, 16
          %s279 = scalar_lea.hbm %s4, %s278
          %s280 = sadd.s32 3, %s228
          %s281 = scalar_lea.vmem [#allocation2], %s280
          // Predicated region
          $region53: #{tpu_custom_call.1} parent=39 // pred_check
            _
          $region54: #{tpu_custom_call.1} parent=39 // pred_check_branch
            %283 = sbr.rel target = $region56
          $region55: #{tpu_custom_call.1} parent=39 // pred_region
            %284 = sst [smem:[#allocation12]] [#allocation19]
            %285 = sst [smem:[#allocation13]] [#allocation18]
          $region56: #{tpu_custom_call.1} parent=39 // pred_fallthru
            _
          %287 = shalt.err (0)
          %s289 = sshll.u32 %s281, 4
          %s290 = int_to_ptr.vmem [resolvable:$true] %s289
          %292 = dma.hbm_to_vmem [thread:$0]  %s279, 16, %s290, %s230
          %s293 = sadd.s32 %s208, 4
          %s294 = sld [smem:[#allocation5 + %s293]]
          %s295 = smul.addr %s294, 16
          %s296 = scalar_lea.hbm %s4, %s295
          %s297 = sadd.s32 4, %s228
          %s298 = scalar_lea.vmem [#allocation2], %s297
          // Predicated region
          $region57: #{tpu_custom_call.1} parent=39 // pred_check
            _
          $region58: #{tpu_custom_call.1} parent=39 // pred_check_branch
            %300 = sbr.rel target = $region60
          $region59: #{tpu_custom_call.1} parent=39 // pred_region
            %301 = sst [smem:[#allocation12]] [#allocation21]
            %302 = sst [smem:[#allocation13]] [#allocation20]
          $region60: #{tpu_custom_call.1} parent=39 // pred_fallthru
            _
          %304 = shalt.err (0)
          %s306 = sshll.u32 %s298, 4
          %s307 = int_to_ptr.vmem [resolvable:$true] %s306
          %309 = dma.hbm_to_vmem [thread:$0]  %s296, 16, %s307, %s230
          %s310 = sadd.s32 %s208, 5
          %s311 = sld [smem:[#allocation5 + %s310]]
          %s312 = smul.addr %s311, 16
          %s313 = scalar_lea.hbm %s4, %s312
          %s314 = sadd.s32 5, %s228
          %s315 = scalar_lea.vmem [#allocation2], %s314
          // Predicated region
          $region61: #{tpu_custom_call.1} parent=39 // pred_check
            _
          $region62: #{tpu_custom_call.1} parent=39 // pred_check_branch
            %317 = sbr.rel target = $region64
          $region63: #{tpu_custom_call.1} parent=39 // pred_region
            %318 = sst [smem:[#allocation12]] [#allocation23]
            %319 = sst [smem:[#allocation13]] [#allocation22]
          $region64: #{tpu_custom_call.1} parent=39 // pred_fallthru
            _
          %321 = shalt.err (0)
          %s323 = sshll.u32 %s315, 4
          %s324 = int_to_ptr.vmem [resolvable:$true] %s323
          %326 = dma.hbm_to_vmem [thread:$0]  %s313, 16, %s324, %s230
          %s327 = sadd.s32 %s208, 6
          %s328 = sld [smem:[#allocation5 + %s327]]
          %s329 = smul.addr %s328, 16
          %s330 = scalar_lea.hbm %s4, %s329
          %s331 = sadd.s32 6, %s228
          %s332 = scalar_lea.vmem [#allocation2], %s331
          // Predicated region
          $region65: #{tpu_custom_call.1} parent=39 // pred_check
            _
          $region66: #{tpu_custom_call.1} parent=39 // pred_check_branch
            %334 = sbr.rel target = $region68
          $region67: #{tpu_custom_call.1} parent=39 // pred_region
            %335 = sst [smem:[#allocation12]] [#allocation25]
            %336 = sst [smem:[#allocation13]] [#allocation24]
          $region68: #{tpu_custom_call.1} parent=39 // pred_fallthru
            _
          %338 = shalt.err (0)
          %s340 = sshll.u32 %s332, 4
          %s341 = int_to_ptr.vmem [resolvable:$true] %s340
          %343 = dma.hbm_to_vmem [thread:$0]  %s330, 16, %s341, %s230
          %s344 = sadd.s32 %s208, 7
          %s345 = sld [smem:[#allocation5 + %s344]]
          %s346 = smul.addr %s345, 16
          %s347 = scalar_lea.hbm %s4, %s346
          %s348 = sadd.s32 7, %s228
          %s349 = scalar_lea.vmem [#allocation2], %s348
          // Predicated region
          $region69: #{tpu_custom_call.1} parent=39 // pred_check
            _
          $region70: #{tpu_custom_call.1} parent=39 // pred_check_branch
            %351 = sbr.rel target = $region72
          $region71: #{tpu_custom_call.1} parent=39 // pred_region
            %352 = sst [smem:[#allocation12]] [#allocation27]
            %353 = sst [smem:[#allocation13]] [#allocation26]
          $region72: #{tpu_custom_call.1} parent=39 // pred_fallthru
            _
          %355 = shalt.err (0)
          %s357 = sshll.u32 %s349, 4
          %s358 = int_to_ptr.vmem [resolvable:$true] %s357
          %360 = dma.hbm_to_vmem [thread:$0]  %s347, 16, %s358, %s230
        $region40: #{tpu_custom_call.1} parent=31 // pred_fallthru
          _
        %s361 = sadd.s32 %s31, 1
        %p362 = scmp.lt.s32.totalorder %s361, 2
        // Predicated region
        $region73: #{tpu_custom_call.1} parent=31 // pred_check
          %p363 = pneg %p362
        $region74: #{tpu_custom_call.1} parent=31 // pred_check_branch
          %365 = sbr.rel (%p363) target = $region76
        $region75: #{tpu_custom_call.1} parent=31 // pred_region
          %s366 = sadd.s32 %s208, 8
          %s367 = ssub.s32 1, %s220
          %s368 = sld [smem:[#allocation5 + %s366]]
          %s369 = smul.addr %s368, 16
          %s370 = scalar_lea.hbm %s4, %s369
          %s371 = smul.u32 %s367, 8
          %s372 = scalar_lea.vmem [#allocation2], %s371
          %s373 = scalar_lea.sflag [#allocation3], %s367
          // Predicated region
          $region77: #{tpu_custom_call.1} parent=75 // pred_check
            _
          $region78: #{tpu_custom_call.1} parent=75 // pred_check_branch
            %375 = sbr.rel target = $region80
          $region79: #{tpu_custom_call.1} parent=75 // pred_region
            %376 = sst [smem:[#allocation12]] [#allocation29]
            %377 = sst [smem:[#allocation13]] [#allocation28]
          $region80: #{tpu_custom_call.1} parent=75 // pred_fallthru
            _
          %379 = shalt.err (0)
          %s381 = sshll.u32 %s372, 4
          %s382 = int_to_ptr.vmem [resolvable:$true] %s381
          %384 = dma.hbm_to_vmem [thread:$0]  %s370, 16, %s382, %s373
          %s385 = sadd.s32 %s208, 9
          %s386 = sld [smem:[#allocation5 + %s385]]
          %s387 = smul.addr %s386, 16
          %s388 = scalar_lea.hbm %s4, %s387
          %s389 = sadd.s32 1, %s371
          %s390 = scalar_lea.vmem [#allocation2], %s389
          // Predicated region
          $region81: #{tpu_custom_call.1} parent=75 // pred_check
            _
          $region82: #{tpu_custom_call.1} parent=75 // pred_check_branch
            %392 = sbr.rel target = $region84
          $region83: #{tpu_custom_call.1} parent=75 // pred_region
            %393 = sst [smem:[#allocation12]] [#allocation31]
            %394 = sst [smem:[#allocation13]] [#allocation30]
          $region84: #{tpu_custom_call.1} parent=75 // pred_fallthru
            _
          %396 = shalt.err (0)
          %s398 = sshll.u32 %s390, 4
          %s399 = int_to_ptr.vmem [resolvable:$true] %s398
          %401 = dma.hbm_to_vmem [thread:$0]  %s388, 16, %s399, %s373
          %s402 = sadd.s32 %s208, 10
          %s403 = sld [smem:[#allocation5 + %s402]]
          %s404 = smul.addr %s403, 16
          %s405 = scalar_lea.hbm %s4, %s404
          %s406 = sadd.s32 2, %s371
          %s407 = scalar_lea.vmem [#allocation2], %s406
          // Predicated region
          $region85: #{tpu_custom_call.1} parent=75 // pred_check
            _
          $region86: #{tpu_custom_call.1} parent=75 // pred_check_branch
            %409 = sbr.rel target = $region88
          $region87: #{tpu_custom_call.1} parent=75 // pred_region
            %410 = sst [smem:[#allocation12]] [#allocation33]
            %411 = sst [smem:[#allocation13]] [#allocation32]
          $region88: #{tpu_custom_call.1} parent=75 // pred_fallthru
            _
          %413 = shalt.err (0)
          %s415 = sshll.u32 %s407, 4
          %s416 = int_to_ptr.vmem [resolvable:$true] %s415
          %418 = dma.hbm_to_vmem [thread:$0]  %s405, 16, %s416, %s373
          %s419 = sadd.s32 %s208, 11
          %s420 = sld [smem:[#allocation5 + %s419]]
          %s421 = smul.addr %s420, 16
          %s422 = scalar_lea.hbm %s4, %s421
          %s423 = sadd.s32 3, %s371
          %s424 = scalar_lea.vmem [#allocation2], %s423
          // Predicated region
          $region89: #{tpu_custom_call.1} parent=75 // pred_check
            _
          $region90: #{tpu_custom_call.1} parent=75 // pred_check_branch
            %426 = sbr.rel target = $region92
          $region91: #{tpu_custom_call.1} parent=75 // pred_region
            %427 = sst [smem:[#allocation12]] [#allocation35]
            %428 = sst [smem:[#allocation13]] [#allocation34]
          $region92: #{tpu_custom_call.1} parent=75 // pred_fallthru
            _
          %430 = shalt.err (0)
          %s432 = sshll.u32 %s424, 4
          %s433 = int_to_ptr.vmem [resolvable:$true] %s432
          %435 = dma.hbm_to_vmem [thread:$0]  %s422, 16, %s433, %s373
          %s436 = sadd.s32 %s208, 12
          %s437 = sld [smem:[#allocation5 + %s436]]
          %s438 = smul.addr %s437, 16
          %s439 = scalar_lea.hbm %s4, %s438
          %s440 = sadd.s32 4, %s371
          %s441 = scalar_lea.vmem [#allocation2], %s440
          // Predicated region
          $region93: #{tpu_custom_call.1} parent=75 // pred_check
            _
          $region94: #{tpu_custom_call.1} parent=75 // pred_check_branch
            %443 = sbr.rel target = $region96
          $region95: #{tpu_custom_call.1} parent=75 // pred_region
            %444 = sst [smem:[#allocation12]] [#allocation37]
            %445 = sst [smem:[#allocation13]] [#allocation36]
          $region96: #{tpu_custom_call.1} parent=75 // pred_fallthru
            _
          %447 = shalt.err (0)
          %s449 = sshll.u32 %s441, 4
          %s450 = int_to_ptr.vmem [resolvable:$true] %s449
          %452 = dma.hbm_to_vmem [thread:$0]  %s439, 16, %s450, %s373
          %s453 = sadd.s32 %s208, 13
          %s454 = sld [smem:[#allocation5 + %s453]]
          %s455 = smul.addr %s454, 16
          %s456 = scalar_lea.hbm %s4, %s455
          %s457 = sadd.s32 5, %s371
          %s458 = scalar_lea.vmem [#allocation2], %s457
          // Predicated region
          $region97: #{tpu_custom_call.1} parent=75 // pred_check
            _
          $region98: #{tpu_custom_call.1} parent=75 // pred_check_branch
            %460 = sbr.rel target = $region100
          $region99: #{tpu_custom_call.1} parent=75 // pred_region
            %461 = sst [smem:[#allocation12]] [#allocation39]
            %462 = sst [smem:[#allocation13]] [#allocation38]
          $region100: #{tpu_custom_call.1} parent=75 // pred_fallthru
            _
          %464 = shalt.err (0)
          %s466 = sshll.u32 %s458, 4
          %s467 = int_to_ptr.vmem [resolvable:$true] %s466
          %469 = dma.hbm_to_vmem [thread:$0]  %s456, 16, %s467, %s373
          %s470 = sadd.s32 %s208, 14
          %s471 = sld [smem:[#allocation5 + %s470]]
          %s472 = smul.addr %s471, 16
          %s473 = scalar_lea.hbm %s4, %s472
          %s474 = sadd.s32 6, %s371
          %s475 = scalar_lea.vmem [#allocation2], %s474
          // Predicated region
          $region101: #{tpu_custom_call.1} parent=75 // pred_check
            _
          $region102: #{tpu_custom_call.1} parent=75 // pred_check_branch
            %477 = sbr.rel target = $region104
          $region103: #{tpu_custom_call.1} parent=75 // pred_region
            %478 = sst [smem:[#allocation12]] [#allocation41]
            %479 = sst [smem:[#allocation13]] [#allocation40]
          $region104: #{tpu_custom_call.1} parent=75 // pred_fallthru
            _
          %481 = shalt.err (0)
          %s483 = sshll.u32 %s475, 4
          %s484 = int_to_ptr.vmem [resolvable:$true] %s483
          %486 = dma.hbm_to_vmem [thread:$0]  %s473, 16, %s484, %s373
          %s487 = sadd.s32 %s208, 15
          %s488 = sld [smem:[#allocation5 + %s487]]
          %s489 = smul.addr %s488, 16
          %s490 = scalar_lea.hbm %s4, %s489
          %s491 = sadd.s32 7, %s371
          %s492 = scalar_lea.vmem [#allocation2], %s491
          // Predicated region
          $region105: #{tpu_custom_call.1} parent=75 // pred_check
            _
          $region106: #{tpu_custom_call.1} parent=75 // pred_check_branch
            %494 = sbr.rel target = $region108
          $region107: #{tpu_custom_call.1} parent=75 // pred_region
            %495 = sst [smem:[#allocation12]] [#allocation43]
            %496 = sst [smem:[#allocation13]] [#allocation42]
          $region108: #{tpu_custom_call.1} parent=75 // pred_fallthru
            _
          %498 = shalt.err (0)
          %s500 = sshll.u32 %s492, 4
          %s501 = int_to_ptr.vmem [resolvable:$true] %s500
          %503 = dma.hbm_to_vmem [thread:$0]  %s490, 16, %s501, %s373
        $region76: #{tpu_custom_call.1} parent=31 // pred_fallthru
          _
        %s504 = sld [smem:[#allocation5 + %s208]]
        %s505 = scalar_lea.sflag [#allocation3], %s220
        %507 = dma.done %s505, 16
        %s508 = sadd.s32 %s208, 1
        %s509 = sld [smem:[#allocation5 + %s508]]
        %511 = dma.done %s505, 16
        %s512 = sadd.s32 %s208, 2
        %s513 = sld [smem:[#allocation5 + %s512]]
        %515 = dma.done %s505, 16
        %s516 = sadd.s32 %s208, 3
        %s517 = sld [smem:[#allocation5 + %s516]]
        %519 = dma.done %s505, 16
        %s520 = sadd.s32 %s208, 4
        %s521 = sld [smem:[#allocation5 + %s520]]
        %523 = dma.done %s505, 16
        %s524 = sadd.s32 %s208, 5
        %s525 = sld [smem:[#allocation5 + %s524]]
        %527 = dma.done %s505, 16
        %s528 = sadd.s32 %s208, 6
        %s529 = sld [smem:[#allocation5 + %s528]]
        %531 = dma.done %s505, 16
        %s532 = sadd.s32 %s208, 7
        %s533 = sld [smem:[#allocation5 + %s532]]
        %535 = dma.done %s505, 16
        %s536 = smul.u32 %s220, 8
        %s537 = scalar_lea.vmem [#allocation2], %s536
        %v538 = vld [vmem:[%s537] sm:$0xff]
        %v539 = vld [vmem:[%s183] sm:$0xff]
        %v540 = vadd.f32 %v538, %v539
        %541 = vadd.xlane.f32.xlu0 %v540
        %v542 = vpop.xlane.xlu0 %541
        %v543 = vrcp.pop 128.0
        %v544 = vmul.f32 %v542, %v543
        %v545 = vsub.f32 %v540, %v544
        %v546 = vmul.f32 %v545, %v545
        %547 = vadd.xlane.f32.xlu0 %v546
        %v548 = vpop.xlane.xlu0 %547
        %v549 = vmul.f32 %v548, %v543
        %v550 = vadd.f32 %v549, 1e-05
        %v551 = vrsqrt.pop %v550
        %v552 = vmul.f32 %v545, %v551
        %v553 = vld [vmem:[%s2] sm:$0x1]
        %v555 = vlaneseq
        %v556 = vshrl.u32 %v555, 7
        %v557 = vsub.s32 0, %v556
        %v558 = vrot.slane %v553, %v557
        %v560 = vmul.f32 %v552, %v558
        %v561 = vld [vmem:[%s3] sm:$0x1]
        %v563 = vlaneseq
        %v564 = vshrl.u32 %v563, 7
        %v565 = vsub.s32 0, %v564
        %v566 = vrot.slane %v561, %v565
        %v568 = vadd.f32 %v560, %v566
        %569 = vst [vmem:[%s205] sm:$0xff] %v568
        %s570 = sand.u32 %s116, 1
        %s571 = scalar_lea.sflag [#allocation8], %s570
        %s572 = sand.u32 %s116, 1
        %s573 = smul.addr %s572, 8
        %s574 = scalar_lea.vmem [#allocation9], %s573
        // Predicated region
        $region109: #{tpu_custom_call.1} parent=31 // pred_check
          %p575 = pneg %p126
        $region110: #{tpu_custom_call.1} parent=31 // pred_check_branch
          %577 = sbr.rel (%p575) target = $region112
        $region111: #{tpu_custom_call.1} parent=31 // pred_region
          %s579 = ssub.s32 128, 128
          %580 = vsyncadd %s571, %s579
          %s581 = smul.addr %s30, 2
          %s582 = sadd.s32 %s31, %s581
          %s583 = smul.addr %s582, 128
          %s584 = scalar_lea.hbm %s5, %s583
          %s586 = sshll.u32 %s574, 4
          %s587 = int_to_ptr.vmem [resolvable:$true] %s586
          %589 = dma.vmem_to_hbm [thread:$0]  %s587, 128, %s584, %s571
        $region112: #{tpu_custom_call.1} parent=31 // pred_fallthru
          _
      $region32: #{tpu_custom_call.1} parent=5 // pred_fallthru
        _
      %p590 = scmp.le.s32.totalorder 2, %s21
      // Predicated region
      $region113: #{tpu_custom_call.1} parent=5 // pred_check
        %p591 = pneg %p590
      $region114: #{tpu_custom_call.1} parent=5 // pred_check_branch
        %593 = sbr.rel (%p591) target = $region116
      $region115: #{tpu_custom_call.1} parent=5 // pred_region
        %s594 = ssub.s32 %s21, 2
        // Predicated region
        $region117: #{tpu_custom_call.1} parent=115 // pred_check
          %p595 = pneg %p132
        $region118: #{tpu_custom_call.1} parent=115 // pred_check_branch
          %597 = sbr.rel (%p595) target = $region120
        $region119: #{tpu_custom_call.1} parent=115 // pred_region
          %s598 = sand.u32 %s117, 1
          %s599 = scalar_lea.sflag [#allocation8], %s598
          %s600 = sand.u32 %s117, 1
          %s601 = smul.addr %s600, 8
          %s602 = scalar_lea.vmem [#allocation9], %s601
          %603 = dma.done %s599, 128
        $region120: #{tpu_custom_call.1} parent=115 // pred_fallthru
          _
      $region116: #{tpu_custom_call.1} parent=5 // pred_fallthru
        _
    $region6: #{tpu_custom_call.1} parent=1 // loop_footer
      %s25 = sadd.s32 1, %s21
    $region7: #{tpu_custom_call.1} parent=1 // loop_footer_branch
      %20 = sbr.rel target = $region3
    $region8: #{tpu_custom_call.1} parent=1 // loop_exit
      _
    %604 = vsyncpa [#allocation7], 1
    %s605 = scalar_lea.sflag [#allocation7], 1
    %606 = vsyncpa %s605, 1
    %607 = vsyncpa [#allocation8], 1
    %s608 = scalar_lea.sflag [#allocation8], 1
    %609 = vsyncpa %s608, 1
  %610 = vsyncmov [#allocation3]
  %s611 = vpop.sfrf %610
  %p612 = scmp.eq.s32.totalorder %s611, 0
  %p613 = pneg %p612
  %615 = shalt.err (%p613)
  %s616 = scalar_lea.sflag [#allocation3], 1
  %617 = vsyncmov %s616
  %s618 = vpop.sfrf %617
  %p619 = scmp.eq.s32.totalorder %s618, 0
  %p620 = pneg %p619
  %622 = shalt.err (%p620)

</llo_original>
